<compile_context>
chip_gen: v7x
topology: tpu7x:2x2x1
jax: 0.10.0
libtpu: 0.0.40
codegen_flags: <defaults>
</compile_context>

<pallas_src>
import numpy as np
import jax
import jax.numpy as jnp
from jax import lax
from jax.experimental import pallas as pl
from jax.experimental.pallas import tpu as pltpu


# ----------------------------------------------------------------------------
# Fused Pallas kernel: conv -> ReLU -> flatten -> dense -> ReLU -> dense
# ----------------------------------------------------------------------------

def _fused_interval_kernel(l0_ref, u0_ref,
                           wc_ref, wca_ref, bc_ref,
                           w1_ref, w1a_ref, b1_ref,
                           w2_ref, w2a_ref, b2_ref,
                           l_out_ref, u_out_ref, m1_ref, m2_ref):
    """All tensors live in VMEM; one grid step processes the whole batch.

    l0/u0 : (B, Cin*Hp*Wp)   padded input bounds, NCHW flatten order
    wc    : (Cin*Hp*Wp, Cout*Ho*Wo)  unrolled conv matrix (wca = |wc|)
    bc    : (1, Cout*Ho*Wo)  conv bias repeated per spatial position
    w1/w2 : pre-transposed dense weights (Din, Dout), w*a = |w*|
    b1/b2 : (1, Dout)
    """

    def interval_affine(l, u, w, wa, b):
        c = (l + u) * 0.5
        e = (u - l) * 0.5
        cn = jnp.dot(c, w, preferred_element_type=jnp.float32) + b
        en = jnp.dot(e, wa, preferred_element_type=jnp.float32)
        return cn - en, cn + en

    def interval_relu(l, u):
        appr = jnp.logical_and(l < 0.0, u > 0.0).astype(l.dtype)
        mask = appr * (u / (u - l + 1e-6)) + (1.0 - appr)
        mask = mask * (u > 0.0).astype(l.dtype)
        return jnp.maximum(l, 0.0), jnp.maximum(u, 0.0), mask

    l = l0_ref[...]
    u = u0_ref[...]

    # Conv2d (as one unrolled matmul) + fused ReLU epilogue.
    l, u = interval_affine(l, u, wc_ref[...], wca_ref[...], bc_ref[...])
    l, u, m = interval_relu(l, u)
    m1_ref[...] = m.astype(m1_ref.dtype)

    # Flatten: no-op — activations are already (B, Cout*Ho*Wo) in NCHW order.

    # Dense 1 + fused ReLU epilogue.
    l, u = interval_affine(l, u, w1_ref[...], w1a_ref[...], b1_ref[...])
    l, u, m = interval_relu(l, u)
    m2_ref[...] = m.astype(m2_ref.dtype)

    # Dense 2 (final bounds).
    l, u = interval_affine(l, u, w2_ref[...], w2a_ref[...], b2_ref[...])
    l_out_ref[...] = l.astype(l_out_ref.dtype)
    u_out_ref[...] = u.astype(u_out_ref.dtype)


# ----------------------------------------------------------------------------
# Construction-time helpers
# ----------------------------------------------------------------------------

def _unrolled_conv_matrix(w_oihw, Hp, Wp, Ho, Wo):
    """Dense matrix M so that (padded NCHW input, flattened) @ M == conv output
    flattened in NCHW order (stride 1)."""
    Cout, Cin, KH, KW = w_oihw.shape
    m = np.zeros((Cin, Hp, Wp, Cout, Ho, Wo), dtype=w_oihw.dtype)
    for kh in range(KH):
        for kw in range(KW):
            wk = np.transpose(w_oihw[:, :, kh, kw])  # (Cin, Cout)
            for ho in range(Ho):
                for wo in range(Wo):
                    m[:, ho + kh, wo + kw, :, ho, wo] = wk
    return m.reshape(Cin * Hp * Wp, Cout * Ho * Wo)


def _full_spec(shape):
    zeros = (0,) * len(shape)
    return pl.BlockSpec(shape, lambda i, z=zeros: z)


# ----------------------------------------------------------------------------
# Interval container + fused network (mirrors Interval_network semantics)
# ----------------------------------------------------------------------------

class Interval:
    def __init__(self, lower, upper):
        self.mask = []
        self.update_lu(lower, upper)

    def update_lu(self, l, u):
        self.l = l
        self.u = u
        self.c = (l + u) / 2.0
        self.e = (u - l) / 2.0


class FusedIntervalNetwork:
    """Pallas port of Interval_network for:
       Conv2d(pad=1, stride=1) -> ReLU -> Flatten -> Linear -> ReLU -> Linear
    (naive Interval propagation), fused into a single pallas_call."""

    def __init__(self, conv_w, conv_b, fc1_w, fc1_b, fc2_w, fc2_b,
                 input_chw, padding=1):
        Cin, H, W = input_chw
        Cout, _, KH, KW = conv_w.shape
        Hp, Wp = H + 2 * padding, W + 2 * padding
        Ho, Wo = Hp - KH + 1, Wp - KW + 1
        self.padding = padding
        self.Cin, self.H, self.W = Cin, H, W
        self.Cout, self.Ho, self.Wo = Cout, Ho, Wo
        self.Din0 = Cin * Hp * Wp
        self.Dconv = Cout * Ho * Wo
        self.D1 = fc1_w.shape[0]
        self.D2 = fc2_w.shape[0]

        # Precompute everything data-independent once (incl. |W| and transposes).
        wc = _unrolled_conv_matrix(np.asarray(conv_w, np.float32), Hp, Wp, Ho, Wo)
        self.wc = jnp.asarray(wc)
        self.wca = jnp.abs(self.wc)
        self.bc = jnp.repeat(jnp.asarray(conv_b, jnp.float32), Ho * Wo).reshape(1, -1)
        self.w1 = jnp.asarray(fc1_w, jnp.float32).T       # (Dconv, D1)
        self.w1a = jnp.abs(self.w1)
        self.b1 = jnp.asarray(fc1_b, jnp.float32).reshape(1, -1)
        self.w2 = jnp.asarray(fc2_w, jnp.float32).T       # (D1, D2)
        self.w2a = jnp.abs(self.w2)
        self.b2 = jnp.asarray(fc2_b, jnp.float32).reshape(1, -1)

    def __call__(self, ix):
        l_nchw, u_nchw = ix.l, ix.u
        B = l_nchw.shape[0]
        p = self.padding
        pad = ((0, 0), (0, 0), (p, p), (p, p))
        l0 = jnp.pad(l_nchw, pad).reshape(B, self.Din0)
        u0 = jnp.pad(u_nchw, pad).reshape(B, self.Din0)

        out_shapes = [
            jax.ShapeDtypeStruct((B, self.D2), jnp.float32),     # l_out
            jax.ShapeDtypeStruct((B, self.D2), jnp.float32),     # u_out
            jax.ShapeDtypeStruct((B, self.Dconv), jnp.float32),  # mask after conv ReLU
            jax.ShapeDtypeStruct((B, self.D1), jnp.float32),     # mask after fc1 ReLU
        ]
        in_specs = [
            _full_spec((B, self.Din0)), _full_spec((B, self.Din0)),
            _full_spec((self.Din0, self.Dconv)), _full_spec((self.Din0, self.Dconv)),
            _full_spec((1, self.Dconv)),
            _full_spec((self.Dconv, self.D1)), _full_spec((self.Dconv, self.D1)),
            _full_spec((1, self.D1)),
            _full_spec((self.D1, self.D2)), _full_spec((self.D1, self.D2)),
            _full_spec((1, self.D2)),
        ]
        out_specs = [
            _full_spec((B, self.D2)), _full_spec((B, self.D2)),
            _full_spec((B, self.Dconv)), _full_spec((B, self.D1)),
        ]

        l_out, u_out, m1, m2 = pl.pallas_call(
            _fused_interval_kernel,
            grid=(1,),
            in_specs=in_specs,
            out_specs=out_specs,
            out_shape=out_shapes,
            compiler_params=pltpu.CompilerParams(
                dimension_semantics=("parallel",)),
        )(l0, u0, self.wc, self.wca, self.bc,
          self.w1, self.w1a, self.b1, self.w2, self.w2a, self.b2)

        ix.mask.append(m1.reshape(B, self.Cout, self.Ho, self.Wo))
        ix.mask.append(m2)
        ix.update_lu(l_out, u_out)
        return ix


# ----------------------------------------------------------------------------
# Pure-JAX reference (semantics of the PyTorch `Interval` branches)
# ----------------------------------------------------------------------------

def reference_forward(l, u, params, padding=1):
    masks = []

    def relu(l, u):
        appr = jnp.logical_and(l < 0.0, u > 0.0).astype(l.dtype)
        mask = appr * (u / (u - l + 1e-6)) + (1.0 - appr)
        mask = mask * (u > 0.0).astype(l.dtype)
        masks.append(mask)
        return jnp.maximum(l, 0.0), jnp.maximum(u, 0.0)

    # Conv2d
    c, e = (l + u) / 2.0, (u - l) / 2.0
    w, b = params["conv_w"], params["conv_b"]
    dn = ("NCHW", "OIHW", "NCHW")
    cn = lax.conv_general_dilated(c, w, (1, 1), ((padding, padding),) * 2,
                                  dimension_numbers=dn) + b[None, :, None, None]
    en = lax.conv_general_dilated(e, jnp.abs(w), (1, 1), ((padding, padding),) * 2,
                                  dimension_numbers=dn)
    l, u = cn - en, cn + en
    l, u = relu(l, u)
    # Flatten
    B = l.shape[0]
    l, u = l.reshape(B, -1), u.reshape(B, -1)
    # Dense 1
    c, e = (l + u) / 2.0, (u - l) / 2.0
    cn = c @ params["fc1_w"].T + params["fc1_b"]
    en = e @ jnp.abs(params["fc1_w"]).T
    l, u = cn - en, cn + en
    l, u = relu(l, u)
    # Dense 2
    c, e = (l + u) / 2.0, (u - l) / 2.0
    cn = c @ params["fc2_w"].T + params["fc2_b"]
    en = e @ jnp.abs(params["fc2_w"]).T
    return cn - en, cn + en, masks


# ----------------------------------------------------------------------------
# Main
# ----------------------------------------------------------------------------

if __name__ == "__main__":
    key = jax.random.PRNGKey(0)
    k1, k2, k3, k4, k5, k6, k7 = jax.random.split(key, 7)

    # Synthetic model: Conv2d(4->8, 3x3, pad=1) -> ReLU -> Flatten
    #                  -> Linear(512->32) -> ReLU -> Linear(32->10)
    B, Cin, H, W = 2, 4, 8, 8
    params = {
        "conv_w": 0.1 * jax.random.normal(k1, (8, 4, 3, 3), jnp.float32),
        "conv_b": 0.1 * jax.random.normal(k2, (8,), jnp.float32),
        "fc1_w": 0.05 * jax.random.normal(k3, (32, 8 * 8 * 8), jnp.float32),
        "fc1_b": 0.05 * jax.random.normal(k4, (32,), jnp.float32),
        "fc2_w": 0.1 * jax.random.normal(k5, (10, 32), jnp.float32),
        "fc2_b": 0.1 * jax.random.normal(k6, (10,), jnp.float32),
    }

    x = jax.random.normal(k7, (B, Cin, H, W), jnp.float32)   # NCHW
    eps = 0.1
    # Interval_Bound 'naive' input construction: clamp(X +/- eps, X.min, X.max)
    x_min, x_max = x.min(), x.max()
    lower = jnp.clip(x - eps, x_min, x_max)
    upper = jnp.clip(x + eps, x_min, x_max)

    net = FusedIntervalNetwork(
        params["conv_w"], params["conv_b"],
        params["fc1_w"], params["fc1_b"],
        params["fc2_w"], params["fc2_b"],
        input_chw=(Cin, H, W), padding=1)

    ix = net(Interval(lower, upper))
    l_out = jax.block_until_ready(ix.l)
    u_out = jax.block_until_ready(ix.u)

    l_ref, u_ref, masks_ref = reference_forward(lower, upper, params)
    np.testing.assert_allclose(np.asarray(l_out), np.asarray(l_ref), rtol=1e-4, atol=1e-4)
    np.testing.assert_allclose(np.asarray(u_out), np.asarray(u_ref), rtol=1e-4, atol=1e-4)
    np.testing.assert_allclose(np.asarray(ix.mask[0]), np.asarray(masks_ref[0]),
                               rtol=1e-4, atol=1e-4)
    np.testing.assert_allclose(np.asarray(ix.mask[1]), np.asarray(masks_ref[1]),
                               rtol=1e-4, atol=1e-4)
    assert l_out.shape == (B, 10) and u_out.shape == (B, 10)
    assert ix.mask[0].shape == (B, 8, 8, 8) and ix.mask[1].shape == (B, 32)

    print("KERNEL_OK")
</pallas_src>

<mosaic_0001>
module attributes {stable_mosaic.version = 11 : i64} {
  func.func @_fused_interval_kernel(%arg0: i32, %arg1: memref<2x400xf32, #tpu.memory_space<vmem>>, %arg2: memref<2x400xf32, #tpu.memory_space<vmem>>, %arg3: memref<400x512xf32, #tpu.memory_space<vmem>>, %arg4: memref<400x512xf32, #tpu.memory_space<vmem>>, %arg5: memref<1x512xf32, #tpu.memory_space<vmem>>, %arg6: memref<512x32xf32, #tpu.memory_space<vmem>>, %arg7: memref<512x32xf32, #tpu.memory_space<vmem>>, %arg8: memref<1x32xf32, #tpu.memory_space<vmem>>, %arg9: memref<32x10xf32, #tpu.memory_space<vmem>>, %arg10: memref<32x10xf32, #tpu.memory_space<vmem>>, %arg11: memref<1x10xf32, #tpu.memory_space<vmem>>, %arg12: memref<2x10xf32, #tpu.memory_space<vmem>>, %arg13: memref<2x10xf32, #tpu.memory_space<vmem>>, %arg14: memref<2x512xf32, #tpu.memory_space<vmem>>, %arg15: memref<2x32xf32, #tpu.memory_space<vmem>>) attributes {dimension_semantics = [#tpu.dimension_semantics<parallel>], iteration_bounds = array<i64: 1>, scalar_prefetch = 0 : i64, scratch_operands = 0 : i64, tpu.core_type = #tpu.core_type<tc>, window_params = [{pipeline_mode = #tpu.pipeline_mode<synchronous>, transform_indices = @transform_0, window_bounds = array<i64: 2, 400>}, {pipeline_mode = #tpu.pipeline_mode<synchronous>, transform_indices = @transform_1, window_bounds = array<i64: 2, 400>}, {pipeline_mode = #tpu.pipeline_mode<synchronous>, transform_indices = @transform_2, window_bounds = array<i64: 400, 512>}, {pipeline_mode = #tpu.pipeline_mode<synchronous>, transform_indices = @transform_3, window_bounds = array<i64: 400, 512>}, {pipeline_mode = #tpu.pipeline_mode<synchronous>, transform_indices = @transform_4, window_bounds = array<i64: 1, 512>}, {pipeline_mode = #tpu.pipeline_mode<synchronous>, transform_indices = @transform_5, window_bounds = array<i64: 512, 32>}, {pipeline_mode = #tpu.pipeline_mode<synchronous>, transform_indices = @transform_6, window_bounds = array<i64: 512, 32>}, {pipeline_mode = #tpu.pipeline_mode<synchronous>, transform_indices = @transform_7, window_bounds = array<i64: 1, 32>}, {pipeline_mode = #tpu.pipeline_mode<synchronous>, transform_indices = @transform_8, window_bounds = array<i64: 32, 10>}, {pipeline_mode = #tpu.pipeline_mode<synchronous>, transform_indices = @transform_9, window_bounds = array<i64: 32, 10>}, {pipeline_mode = #tpu.pipeline_mode<synchronous>, transform_indices = @transform_10, window_bounds = array<i64: 1, 10>}, {pipeline_mode = #tpu.pipeline_mode<synchronous>, transform_indices = @transform_11, window_bounds = array<i64: 2, 10>}, {pipeline_mode = #tpu.pipeline_mode<synchronous>, transform_indices = @transform_12, window_bounds = array<i64: 2, 10>}, {pipeline_mode = #tpu.pipeline_mode<synchronous>, transform_indices = @transform_13, window_bounds = array<i64: 2, 512>}, {pipeline_mode = #tpu.pipeline_mode<synchronous>, transform_indices = @transform_14, window_bounds = array<i64: 2, 32>}]} {
    %c0 = arith.constant 0 : index
    %c0_0 = arith.constant 0 : index
    %0 = vector.load %arg1[%c0, %c0_0] : memref<2x400xf32, #tpu.memory_space<vmem>>, vector<2x400xf32>
    %c0_1 = arith.constant 0 : index
    %c0_2 = arith.constant 0 : index
    %1 = vector.load %arg2[%c0_1, %c0_2] : memref<2x400xf32, #tpu.memory_space<vmem>>, vector<2x400xf32>
    %c0_3 = arith.constant 0 : index
    %c0_4 = arith.constant 0 : index
    %2 = vector.load %arg3[%c0_3, %c0_4] : memref<400x512xf32, #tpu.memory_space<vmem>>, vector<400x512xf32>
    %c0_5 = arith.constant 0 : index
    %c0_6 = arith.constant 0 : index
    %3 = vector.load %arg4[%c0_5, %c0_6] : memref<400x512xf32, #tpu.memory_space<vmem>>, vector<400x512xf32>
    %c0_7 = arith.constant 0 : index
    %c0_8 = arith.constant 0 : index
    %4 = vector.load %arg5[%c0_7, %c0_8] : memref<1x512xf32, #tpu.memory_space<vmem>>, vector<1x512xf32>
    %5 = arith.addf %0, %1 : vector<2x400xf32>
    %cst = arith.constant 5.000000e-01 : f32
    %6 = vector.broadcast %cst : f32 to vector<2x400xf32>
    %7 = arith.mulf %5, %6 : vector<2x400xf32>
    %8 = arith.subf %1, %0 : vector<2x400xf32>
    %cst_9 = arith.constant 5.000000e-01 : f32
    %9 = vector.broadcast %cst_9 : f32 to vector<2x400xf32>
    %10 = arith.mulf %8, %9 : vector<2x400xf32>
    %cst_10 = arith.constant dense<0.000000e+00> : vector<2x512xf32>
    %11 = tpu.matmul %7, %2, %cst_10 {dimension_numbers = #tpu.dot_dimension_numbers<[1], [0], [0], [1], [0, 0, 1, 1], [], []>} : vector<2x400xf32>, vector<400x512xf32>, vector<2x512xf32> -> vector<2x512xf32>
    %12 = vector.broadcast %4 : vector<1x512xf32> to vector<2x512xf32>
    %13 = arith.addf %11, %12 : vector<2x512xf32>
    %cst_11 = arith.constant dense<0.000000e+00> : vector<2x512xf32>
    %14 = tpu.matmul %10, %3, %cst_11 {dimension_numbers = #tpu.dot_dimension_numbers<[1], [0], [0], [1], [0, 0, 1, 1], [], []>} : vector<2x400xf32>, vector<400x512xf32>, vector<2x512xf32> -> vector<2x512xf32>
    %15 = arith.subf %13, %14 : vector<2x512xf32>
    %16 = arith.addf %13, %14 : vector<2x512xf32>
    %cst_12 = arith.constant 0.000000e+00 : f32
    %17 = vector.broadcast %cst_12 : f32 to vector<2x512xf32>
    %18 = arith.cmpf olt, %15, %17 : vector<2x512xf32>
    %cst_13 = arith.constant 0.000000e+00 : f32
    %19 = vector.broadcast %cst_13 : f32 to vector<2x512xf32>
    %20 = arith.cmpf ogt, %16, %19 : vector<2x512xf32>
    %21 = arith.andi %18, %20 : vector<2x512xi1>
    %22 = arith.extui %21 : vector<2x512xi1> to vector<2x512xi32>
    %23 = arith.sitofp %22 : vector<2x512xi32> to vector<2x512xf32>
    %24 = arith.subf %16, %15 : vector<2x512xf32>
    %cst_14 = arith.constant 9.99999997E-7 : f32
    %25 = vector.broadcast %cst_14 : f32 to vector<2x512xf32>
    %26 = arith.addf %24, %25 : vector<2x512xf32>
    %27 = arith.divf %16, %26 : vector<2x512xf32>
    %28 = arith.mulf %23, %27 : vector<2x512xf32>
    %cst_15 = arith.constant 1.000000e+00 : f32
    %29 = vector.broadcast %cst_15 : f32 to vector<2x512xf32>
    %30 = arith.subf %29, %23 : vector<2x512xf32>
    %31 = arith.addf %28, %30 : vector<2x512xf32>
    %cst_16 = arith.constant 0.000000e+00 : f32
    %32 = vector.broadcast %cst_16 : f32 to vector<2x512xf32>
    %33 = arith.cmpf ogt, %16, %32 : vector<2x512xf32>
    %34 = arith.extui %33 : vector<2x512xi1> to vector<2x512xi32>
    %35 = arith.sitofp %34 : vector<2x512xi32> to vector<2x512xf32>
    %36 = arith.mulf %31, %35 : vector<2x512xf32>
    %cst_17 = arith.constant 0.000000e+00 : f32
    %37 = vector.broadcast %cst_17 : f32 to vector<2x512xf32>
    %38 = arith.maximumf %15, %37 : vector<2x512xf32>
    %cst_18 = arith.constant 0.000000e+00 : f32
    %39 = vector.broadcast %cst_18 : f32 to vector<2x512xf32>
    %40 = arith.maximumf %16, %39 : vector<2x512xf32>
    %c0_19 = arith.constant 0 : index
    %c0_20 = arith.constant 0 : index
    %41 = vector.load %arg14[%c0_19, %c0_20] : memref<2x512xf32, #tpu.memory_space<vmem>>, vector<2x512xf32>
    tpu.vector_store %arg14[%c0_19, %c0_20], %36 {strides = array<i32>} : memref<2x512xf32, #tpu.memory_space<vmem>>, vector<2x512xf32>,
    %c0_21 = arith.constant 0 : index
    %c0_22 = arith.constant 0 : index
    %42 = vector.load %arg6[%c0_21, %c0_22] : memref<512x32xf32, #tpu.memory_space<vmem>>, vector<512x32xf32>
    %c0_23 = arith.constant 0 : index
    %c0_24 = arith.constant 0 : index
    %43 = vector.load %arg7[%c0_23, %c0_24] : memref<512x32xf32, #tpu.memory_space<vmem>>, vector<512x32xf32>
    %c0_25 = arith.constant 0 : index
    %c0_26 = arith.constant 0 : index
    %44 = vector.load %arg8[%c0_25, %c0_26] : memref<1x32xf32, #tpu.memory_space<vmem>>, vector<1x32xf32>
    %45 = arith.addf %38, %40 : vector<2x512xf32>
    %cst_27 = arith.constant 5.000000e-01 : f32
    %46 = vector.broadcast %cst_27 : f32 to vector<2x512xf32>
    %47 = arith.mulf %45, %46 : vector<2x512xf32>
    %48 = arith.subf %40, %38 : vector<2x512xf32>
    %cst_28 = arith.constant 5.000000e-01 : f32
    %49 = vector.broadcast %cst_28 : f32 to vector<2x512xf32>
    %50 = arith.mulf %48, %49 : vector<2x512xf32>
    %cst_29 = arith.constant dense<0.000000e+00> : vector<2x32xf32>
    %51 = tpu.matmul %47, %42, %cst_29 {dimension_numbers = #tpu.dot_dimension_numbers<[1], [0], [0], [1], [0, 0, 1, 1], [], []>} : vector<2x512xf32>, vector<512x32xf32>, vector<2x32xf32> -> vector<2x32xf32>
    %52 = vector.broadcast %44 : vector<1x32xf32> to vector<2x32xf32>
    %53 = arith.addf %51, %52 : vector<2x32xf32>
    %cst_30 = arith.constant dense<0.000000e+00> : vector<2x32xf32>
    %54 = tpu.matmul %50, %43, %cst_30 {dimension_numbers = #tpu.dot_dimension_numbers<[1], [0], [0], [1], [0, 0, 1, 1], [], []>} : vector<2x512xf32>, vector<512x32xf32>, vector<2x32xf32> -> vector<2x32xf32>
    %55 = arith.subf %53, %54 : vector<2x32xf32>
    %56 = arith.addf %53, %54 : vector<2x32xf32>
    %cst_31 = arith.constant 0.000000e+00 : f32
    %57 = vector.broadcast %cst_31 : f32 to vector<2x32xf32>
    %58 = arith.cmpf olt, %55, %57 : vector<2x32xf32>
    %cst_32 = arith.constant 0.000000e+00 : f32
    %59 = vector.broadcast %cst_32 : f32 to vector<2x32xf32>
    %60 = arith.cmpf ogt, %56, %59 : vector<2x32xf32>
    %61 = arith.andi %58, %60 : vector<2x32xi1>
    %62 = arith.extui %61 : vector<2x32xi1> to vector<2x32xi32>
    %63 = arith.sitofp %62 : vector<2x32xi32> to vector<2x32xf32>
    %64 = arith.subf %56, %55 : vector<2x32xf32>
    %cst_33 = arith.constant 9.99999997E-7 : f32
    %65 = vector.broadcast %cst_33 : f32 to vector<2x32xf32>
    %66 = arith.addf %64, %65 : vector<2x32xf32>
    %67 = arith.divf %56, %66 : vector<2x32xf32>
    %68 = arith.mulf %63, %67 : vector<2x32xf32>
    %cst_34 = arith.constant 1.000000e+00 : f32
    %69 = vector.broadcast %cst_34 : f32 to vector<2x32xf32>
    %70 = arith.subf %69, %63 : vector<2x32xf32>
    %71 = arith.addf %68, %70 : vector<2x32xf32>
    %cst_35 = arith.constant 0.000000e+00 : f32
    %72 = vector.broadcast %cst_35 : f32 to vector<2x32xf32>
    %73 = arith.cmpf ogt, %56, %72 : vector<2x32xf32>
    %74 = arith.extui %73 : vector<2x32xi1> to vector<2x32xi32>
    %75 = arith.sitofp %74 : vector<2x32xi32> to vector<2x32xf32>
    %76 = arith.mulf %71, %75 : vector<2x32xf32>
    %cst_36 = arith.constant 0.000000e+00 : f32
    %77 = vector.broadcast %cst_36 : f32 to vector<2x32xf32>
    %78 = arith.maximumf %55, %77 : vector<2x32xf32>
    %cst_37 = arith.constant 0.000000e+00 : f32
    %79 = vector.broadcast %cst_37 : f32 to vector<2x32xf32>
    %80 = arith.maximumf %56, %79 : vector<2x32xf32>
    %c0_38 = arith.constant 0 : index
    %c0_39 = arith.constant 0 : index
    %81 = vector.load %arg15[%c0_38, %c0_39] : memref<2x32xf32, #tpu.memory_space<vmem>>, vector<2x32xf32>
    tpu.vector_store %arg15[%c0_38, %c0_39], %76 {strides = array<i32>} : memref<2x32xf32, #tpu.memory_space<vmem>>, vector<2x32xf32>,
    %c0_40 = arith.constant 0 : index
    %c0_41 = arith.constant 0 : index
    %82 = vector.load %arg9[%c0_40, %c0_41] : memref<32x10xf32, #tpu.memory_space<vmem>>, vector<32x10xf32>
    %c0_42 = arith.constant 0 : index
    %c0_43 = arith.constant 0 : index
    %83 = vector.load %arg10[%c0_42, %c0_43] : memref<32x10xf32, #tpu.memory_space<vmem>>, vector<32x10xf32>
    %c0_44 = arith.constant 0 : index
    %c0_45 = arith.constant 0 : index
    %84 = vector.load %arg11[%c0_44, %c0_45] : memref<1x10xf32, #tpu.memory_space<vmem>>, vector<1x10xf32>
    %85 = arith.addf %78, %80 : vector<2x32xf32>
    %cst_46 = arith.constant 5.000000e-01 : f32
    %86 = vector.broadcast %cst_46 : f32 to vector<2x32xf32>
    %87 = arith.mulf %85, %86 : vector<2x32xf32>
    %88 = arith.subf %80, %78 : vector<2x32xf32>
    %cst_47 = arith.constant 5.000000e-01 : f32
    %89 = vector.broadcast %cst_47 : f32 to vector<2x32xf32>
    %90 = arith.mulf %88, %89 : vector<2x32xf32>
    %cst_48 = arith.constant dense<0.000000e+00> : vector<2x10xf32>
    %91 = tpu.matmul %87, %82, %cst_48 {dimension_numbers = #tpu.dot_dimension_numbers<[1], [0], [0], [1], [0, 0, 1, 1], [], []>} : vector<2x32xf32>, vector<32x10xf32>, vector<2x10xf32> -> vector<2x10xf32>
    %92 = vector.broadcast %84 : vector<1x10xf32> to vector<2x10xf32>
    %93 = arith.addf %91, %92 : vector<2x10xf32>
    %cst_49 = arith.constant dense<0.000000e+00> : vector<2x10xf32>
    %94 = tpu.matmul %90, %83, %cst_49 {dimension_numbers = #tpu.dot_dimension_numbers<[1], [0], [0], [1], [0, 0, 1, 1], [], []>} : vector<2x32xf32>, vector<32x10xf32>, vector<2x10xf32> -> vector<2x10xf32>
    %95 = arith.subf %93, %94 : vector<2x10xf32>
    %96 = arith.addf %93, %94 : vector<2x10xf32>
    %c0_50 = arith.constant 0 : index
    %c0_51 = arith.constant 0 : index
    %97 = vector.load %arg12[%c0_50, %c0_51] : memref<2x10xf32, #tpu.memory_space<vmem>>, vector<2x10xf32>
    tpu.vector_store %arg12[%c0_50, %c0_51], %95 {strides = array<i32>} : memref<2x10xf32, #tpu.memory_space<vmem>>, vector<2x10xf32>,
    %c0_52 = arith.constant 0 : index
    %c0_53 = arith.constant 0 : index
    %98 = vector.load %arg13[%c0_52, %c0_53] : memref<2x10xf32, #tpu.memory_space<vmem>>, vector<2x10xf32>
    tpu.vector_store %arg13[%c0_52, %c0_53], %96 {strides = array<i32>} : memref<2x10xf32, #tpu.memory_space<vmem>>, vector<2x10xf32>,
    return
  }
  func.func @transform_0(%arg0: i32) -> (i32, i32) {
    %c0_i32 = arith.constant 0 : i32
    %c0_i32_0 = arith.constant 0 : i32
    %c0_i32_1 = arith.constant 0 : i32
    return %c0_i32, %c0_i32_0 : i32, i32
  }
  func.func @transform_1(%arg0: i32) -> (i32, i32) {
    %c0_i32 = arith.constant 0 : i32
    %c0_i32_0 = arith.constant 0 : i32
    %c0_i32_1 = arith.constant 0 : i32
    return %c0_i32, %c0_i32_0 : i32, i32
  }
  func.func @transform_2(%arg0: i32) -> (i32, i32) {
    %c0_i32 = arith.constant 0 : i32
    %c0_i32_0 = arith.constant 0 : i32
    %c0_i32_1 = arith.constant 0 : i32
    return %c0_i32, %c0_i32_0 : i32, i32
  }
  func.func @transform_3(%arg0: i32) -> (i32, i32) {
    %c0_i32 = arith.constant 0 : i32
    %c0_i32_0 = arith.constant 0 : i32
    %c0_i32_1 = arith.constant 0 : i32
    return %c0_i32, %c0_i32_0 : i32, i32
  }
  func.func @transform_4(%arg0: i32) -> (i32, i32) {
    %c0_i32 = arith.constant 0 : i32
    %c0_i32_0 = arith.constant 0 : i32
    %c0_i32_1 = arith.constant 0 : i32
    return %c0_i32, %c0_i32_0 : i32, i32
  }
  func.func @transform_5(%arg0: i32) -> (i32, i32) {
    %c0_i32 = arith.constant 0 : i32
    %c0_i32_0 = arith.constant 0 : i32
    %c0_i32_1 = arith.constant 0 : i32
    return %c0_i32, %c0_i32_0 : i32, i32
  }
  func.func @transform_6(%arg0: i32) -> (i32, i32) {
    %c0_i32 = arith.constant 0 : i32
    %c0_i32_0 = arith.constant 0 : i32
    %c0_i32_1 = arith.constant 0 : i32
    return %c0_i32, %c0_i32_0 : i32, i32
  }
  func.func @transform_7(%arg0: i32) -> (i32, i32) {
    %c0_i32 = arith.constant 0 : i32
    %c0_i32_0 = arith.constant 0 : i32
    %c0_i32_1 = arith.constant 0 : i32
    return %c0_i32, %c0_i32_0 : i32, i32
  }
  func.func @transform_8(%arg0: i32) -> (i32, i32) {
    %c0_i32 = arith.constant 0 : i32
    %c0_i32_0 = arith.constant 0 : i32
    %c0_i32_1 = arith.constant 0 : i32
    return %c0_i32, %c0_i32_0 : i32, i32
  }
  func.func @transform_9(%arg0: i32) -> (i32, i32) {
    %c0_i32 = arith.constant 0 : i32
    %c0_i32_0 = arith.constant 0 : i32
    %c0_i32_1 = arith.constant 0 : i32
    return %c0_i32, %c0_i32_0 : i32, i32
  }
  func.func @transform_10(%arg0: i32) -> (i32, i32) {
    %c0_i32 = arith.constant 0 : i32
    %c0_i32_0 = arith.constant 0 : i32
    %c0_i32_1 = arith.constant 0 : i32
    return %c0_i32, %c0_i32_0 : i32, i32
  }
  func.func @transform_11(%arg0: i32) -> (i32, i32) {
    %c0_i32 = arith.constant 0 : i32
    %c0_i32_0 = arith.constant 0 : i32
    %c0_i32_1 = arith.constant 0 : i32
    return %c0_i32, %c0_i32_0 : i32, i32
  }
  func.func @transform_12(%arg0: i32) -> (i32, i32) {
    %c0_i32 = arith.constant 0 : i32
    %c0_i32_0 = arith.constant 0 : i32
    %c0_i32_1 = arith.constant 0 : i32
    return %c0_i32, %c0_i32_0 : i32, i32
  }
  func.func @transform_13(%arg0: i32) -> (i32, i32) {
    %c0_i32 = arith.constant 0 : i32
    %c0_i32_0 = arith.constant 0 : i32
    %c0_i32_1 = arith.constant 0 : i32
    return %c0_i32, %c0_i32_0 : i32, i32
  }
  func.func @transform_14(%arg0: i32) -> (i32, i32) {
    %c0_i32 = arith.constant 0 : i32
    %c0_i32_0 = arith.constant 0 : i32
    %c0_i32_1 = arith.constant 0 : i32
    return %c0_i32, %c0_i32_0 : i32, i32
  }
}

</mosaic_0001>

<llo_original>
// kernel: tpu_custom_call.1
$region0: #{tpu_custom_call.1}
  #allocation0 [shape = 'u32[]', space=smem, size = 0x4, offset = 0x4, fixed_abs, tag = 'smem constant byte address 0x4 - core index']
  #allocation1 [shape = 'u32[144,128]{1,0:T(1,128)}', space=vmem, size = 0x12000, scoped, tag = 'internal scratch']
  %s0 = inlined_call_operand.vmem [shape: f32[2,400], index: 0, kind: input, shape index: {}]
  %s1 = inlined_call_operand.vmem [shape: f32[2,400], index: 1, kind: input, shape index: {}]
  %s2 = inlined_call_operand.hbm [shape: f32[400,512], index: 2, kind: input, shape index: {}]
  %s3 = inlined_call_operand.hbm [shape: f32[400,512], index: 3, kind: input, shape index: {}]
  %s4 = inlined_call_operand.vmem [shape: f32[1,512], index: 4, kind: input, shape index: {}]
  %s5 = inlined_call_operand.vmem [shape: f32[512,32], index: 5, kind: input, shape index: {}]
  %s6 = inlined_call_operand.vmem [shape: f32[512,32], index: 6, kind: input, shape index: {}]
  %s7 = inlined_call_operand.vmem [shape: f32[1,32], index: 7, kind: input, shape index: {}]
  %s8 = inlined_call_operand.vmem [shape: f32[32,10], index: 8, kind: input, shape index: {}]
  %s9 = inlined_call_operand.vmem [shape: f32[32,10], index: 9, kind: input, shape index: {}]
  %s10 = inlined_call_operand.vmem [shape: f32[1,10], index: 10, kind: input, shape index: {}]
  %s11 = inlined_call_operand.hbm [shape: f32[2,10], index: 11, kind: output, shape index: {0}]
  %s12 = inlined_call_operand.hbm [shape: f32[2,10], index: 12, kind: output, shape index: {1}]
  %s13 = inlined_call_operand.hbm [shape: f32[2,512], index: 13, kind: output, shape index: {2}]
  %s14 = inlined_call_operand.hbm [shape: f32[2,32], index: 14, kind: output, shape index: {3}]
  %15 = xla_tuple %s11, %s12, %s13, %s14
  %s16 = sld [smem:[#allocation0]]
  $region86: #{tpu_custom_call.1} parent=0
    _
  %s18 = ssub.s32 1, %s16
  %s19 = scalar_select 0, %s18, %s16
  $region1: #{tpu_custom_call.1} parent=0
    #allocation2 [shape = 'u8[819200]{0}', space=vmem, size = 0xc8000, scoped, tag = 'input window, operand 2, single buffered']
    #allocation3 [shape = 's32[1]{0}', space=sflag, size = 0x4, scoped, tag = 'scoped memory for tpu_custom_call.1']
    #allocation4 [shape = 's32[1]{0}', space=sflag, size = 0x4, scoped, tag = 'scoped memory for tpu_custom_call.1']
    #allocation5 [shape = 'u8[819200]{0}', space=vmem, size = 0xc8000, scoped, tag = 'input window, operand 3, single buffered']
    #allocation6 [shape = 's32[1]{0}', space=sflag, size = 0x4, scoped, tag = 'scoped memory for tpu_custom_call.1']
    #allocation7 [shape = 'u8[1024]{0}', space=vmem, size = 0x400, scoped, tag = 'output window, operand 0, single buffered']
    #allocation8 [shape = 'u8[1024]{0}', space=vmem, size = 0x400, scoped, tag = 'output window, operand 1, single buffered']
    #allocation9 [shape = 's32[1]{0}', space=sflag, size = 0x4, scoped, tag = 'scoped memory for tpu_custom_call.1']
    #allocation10 [shape = 'u8[4096]{0}', space=vmem, size = 0x1000, scoped, tag = 'output window, operand 2, single buffered']
    #allocation11 [shape = 'u8[1024]{0}', space=vmem, size = 0x400, scoped, tag = 'output window, operand 3, single buffered']
    #allocation12 [shape = 's32[1]{0}', space=sflag, size = 0x4, scoped, tag = 'scoped memory for tpu_custom_call.1']
    %20 = vsyncpa [#allocation3], 0
    %21 = vsyncpa [#allocation6], 0
    %22 = vsyncpa [#allocation4], 0
    %23 = vsyncpa [#allocation9], 0
    %24 = vsyncpa [#allocation12], 0
    // Predicated region
    $region2: #{tpu_custom_call.1} parent=1 // pred_check
      _
    $region3: #{tpu_custom_call.1} parent=1 // pred_check_branch
      %26 = sbr.rel (0) target = $region5
    $region4: #{tpu_custom_call.1} parent=1 // pred_region
      _
    $region5: #{tpu_custom_call.1} parent=1 // pred_fallthru
      _
    // Predicated region
    $region6: #{tpu_custom_call.1} parent=1 // pred_check
      _
    $region7: #{tpu_custom_call.1} parent=1 // pred_check_branch
      %28 = sbr.rel (0) target = $region9
    $region8: #{tpu_custom_call.1} parent=1 // pred_region
      _
    $region9: #{tpu_custom_call.1} parent=1 // pred_fallthru
      _
    // Predicated region
    $region10: #{tpu_custom_call.1} parent=1 // pred_check
      _
    $region11: #{tpu_custom_call.1} parent=1 // pred_check_branch
      %30 = sbr.rel (0) target = $region13
    $region12: #{tpu_custom_call.1} parent=1 // pred_region
      %s32 = ssub.s32 25600, 25600
      %33 = vsyncadd [#allocation3], %s32
      %s34 = sshll.u32 [#allocation2], 4
      %s35 = int_to_ptr.vmem [resolvable:$true] %s34
      %40 = dma.hbm_to_vmem [thread:$0]  %s2, 25600, %s35, [#allocation3], 512, 512, 32
    $region13: #{tpu_custom_call.1} parent=1 // pred_fallthru
      _
    // Predicated region
    $region14: #{tpu_custom_call.1} parent=1 // pred_check
      _
    $region15: #{tpu_custom_call.1} parent=1 // pred_check_branch
      %42 = sbr.rel (0) target = $region17
    $region16: #{tpu_custom_call.1} parent=1 // pred_region
      %s44 = ssub.s32 25600, 25600
      %45 = vsyncadd [#allocation6], %s44
      %s46 = sshll.u32 [#allocation5], 4
      %s47 = int_to_ptr.vmem [resolvable:$true] %s46
      %52 = dma.hbm_to_vmem [thread:$0]  %s3, 25600, %s47, [#allocation6], 512, 512, 32
    $region17: #{tpu_custom_call.1} parent=1 // pred_fallthru
      _
    // Predicated region
    $region18: #{tpu_custom_call.1} parent=1 // pred_check
      _
    $region19: #{tpu_custom_call.1} parent=1 // pred_check_branch
      %54 = sbr.rel (0) target = $region21
    $region20: #{tpu_custom_call.1} parent=1 // pred_region
      _
    $region21: #{tpu_custom_call.1} parent=1 // pred_fallthru
      _
    // Predicated region
    $region22: #{tpu_custom_call.1} parent=1 // pred_check
      _
    $region23: #{tpu_custom_call.1} parent=1 // pred_check_branch
      %56 = sbr.rel (0) target = $region25
    $region24: #{tpu_custom_call.1} parent=1 // pred_region
      _
    $region25: #{tpu_custom_call.1} parent=1 // pred_fallthru
      _
    // Predicated region
    $region26: #{tpu_custom_call.1} parent=1 // pred_check
      _
    $region27: #{tpu_custom_call.1} parent=1 // pred_check_branch
      %58 = sbr.rel (0) target = $region29
    $region28: #{tpu_custom_call.1} parent=1 // pred_region
      _
    $region29: #{tpu_custom_call.1} parent=1 // pred_fallthru
      _
    // Predicated region
    $region30: #{tpu_custom_call.1} parent=1 // pred_check
      _
    $region31: #{tpu_custom_call.1} parent=1 // pred_check_branch
      %60 = sbr.rel (0) target = $region33
    $region32: #{tpu_custom_call.1} parent=1 // pred_region
      _
    $region33: #{tpu_custom_call.1} parent=1 // pred_fallthru
      _
    // Predicated region
    $region34: #{tpu_custom_call.1} parent=1 // pred_check
      _
    $region35: #{tpu_custom_call.1} parent=1 // pred_check_branch
      %62 = sbr.rel (0) target = $region37
    $region36: #{tpu_custom_call.1} parent=1 // pred_region
      _
    $region37: #{tpu_custom_call.1} parent=1 // pred_fallthru
      _
    // Predicated region
    $region38: #{tpu_custom_call.1} parent=1 // pred_check
      _
    $region39: #{tpu_custom_call.1} parent=1 // pred_check_branch
      %64 = sbr.rel (0) target = $region41
    $region40: #{tpu_custom_call.1} parent=1 // pred_region
      _
    $region41: #{tpu_custom_call.1} parent=1 // pred_fallthru
      _
    // Predicated region
    $region42: #{tpu_custom_call.1} parent=1 // pred_check
      _
    $region43: #{tpu_custom_call.1} parent=1 // pred_check_branch
      %66 = sbr.rel (0) target = $region45
    $region44: #{tpu_custom_call.1} parent=1 // pred_region
      _
    $region45: #{tpu_custom_call.1} parent=1 // pred_fallthru
      _
    // Predicated region
    $region46: #{tpu_custom_call.1} parent=1 // pred_check
      _
    $region47: #{tpu_custom_call.1} parent=1 // pred_check_branch
      %68 = sbr.rel (0) target = $region49
    $region48: #{tpu_custom_call.1} parent=1 // pred_region
      %69 = dma.done [#allocation3], 25600
    $region49: #{tpu_custom_call.1} parent=1 // pred_fallthru
      _
    // Predicated region
    $region50: #{tpu_custom_call.1} parent=1 // pred_check
      _
    $region51: #{tpu_custom_call.1} parent=1 // pred_check_branch
      %71 = sbr.rel (0) target = $region53
    $region52: #{tpu_custom_call.1} parent=1 // pred_region
      %72 = dma.done [#allocation6], 25600
    $region53: #{tpu_custom_call.1} parent=1 // pred_fallthru
      _
    %v73 = vld [vmem:[%s0] sm:$0xff]
    %v74 = vld [vmem:[%s1] sm:$0xff]
    %v75 = vld [vmem:[#allocation2] sm:$0xff]
    %v76 = vld [vmem:[#allocation2 + $0x8] sm:$0xff]
    %v77 = vld [vmem:[#allocation2 + $0x10] sm:$0xff]
    %v78 = vld [vmem:[#allocation2 + $0x18] sm:$0xff]
    %v79 = vld [vmem:[#allocation2 + $0x20] sm:$0xff]
    %v80 = vld [vmem:[#allocation2 + $0x28] sm:$0xff]
    %v81 = vld [vmem:[#allocation2 + $0x30] sm:$0xff]
    %v82 = vld [vmem:[#allocation2 + $0x38] sm:$0xff]
    %v83 = vld [vmem:[#allocation2 + $0x40] sm:$0xff]
    %v84 = vld [vmem:[#allocation2 + $0x48] sm:$0xff]
    %v85 = vld [vmem:[#allocation2 + $0x50] sm:$0xff]
    %v86 = vld [vmem:[#allocation2 + $0x58] sm:$0xff]
    %v87 = vld [vmem:[#allocation2 + $0x60] sm:$0xff]
    %v88 = vld [vmem:[#allocation2 + $0x68] sm:$0xff]
    %v89 = vld [vmem:[#allocation2 + $0x70] sm:$0xff]
    %v90 = vld [vmem:[#allocation2 + $0x78] sm:$0xff]
    %v91 = vld [vmem:[#allocation2 + $0x80] sm:$0xff]
    %v92 = vld [vmem:[#allocation2 + $0x88] sm:$0xff]
    %v93 = vld [vmem:[#allocation2 + $0x90] sm:$0xff]
    %v94 = vld [vmem:[#allocation2 + $0x98] sm:$0xff]
    %v95 = vld [vmem:[#allocation2 + $0xa0] sm:$0xff]
    %v96 = vld [vmem:[#allocation2 + $0xa8] sm:$0xff]
    %v97 = vld [vmem:[#allocation2 + $0xb0] sm:$0xff]
    %v98 = vld [vmem:[#allocation2 + $0xb8] sm:$0xff]
    %v99 = vld [vmem:[#allocation2 + $0xc0] sm:$0xff]
    %v100 = vld [vmem:[#allocation2 + $0xc8] sm:$0xff]
    %v101 = vld [vmem:[#allocation2 + $0xd0] sm:$0xff]
    %v102 = vld [vmem:[#allocation2 + $0xd8] sm:$0xff]
    %v103 = vld [vmem:[#allocation2 + $0xe0] sm:$0xff]
    %v104 = vld [vmem:[#allocation2 + $0xe8] sm:$0xff]
    %v105 = vld [vmem:[#allocation2 + $0xf0] sm:$0xff]
    %v106 = vld [vmem:[#allocation2 + $0xf8] sm:$0xff]
    %v107 = vld [vmem:[#allocation2 + $0x100] sm:$0xff]
    %v108 = vld [vmem:[#allocation2 + $0x108] sm:$0xff]
    %v109 = vld [vmem:[#allocation2 + $0x110] sm:$0xff]
    %v110 = vld [vmem:[#allocation2 + $0x118] sm:$0xff]
    %v111 = vld [vmem:[#allocation2 + $0x120] sm:$0xff]
    %v112 = vld [vmem:[#allocation2 + $0x128] sm:$0xff]
    %v113 = vld [vmem:[#allocation2 + $0x130] sm:$0xff]
    %v114 = vld [vmem:[#allocation2 + $0x138] sm:$0xff]
    %v115 = vld [vmem:[#allocation2 + $0x140] sm:$0xff]
    %v116 = vld [vmem:[#allocation2 + $0x148] sm:$0xff]
    %v117 = vld [vmem:[#allocation2 + $0x150] sm:$0xff]
    %v118 = vld [vmem:[#allocation2 + $0x158] sm:$0xff]
    %v119 = vld [vmem:[#allocation2 + $0x160] sm:$0xff]
    %v120 = vld [vmem:[#allocation2 + $0x168] sm:$0xff]
    %v121 = vld [vmem:[#allocation2 + $0x170] sm:$0xff]
    %v122 = vld [vmem:[#allocation2 + $0x178] sm:$0xff]
    %v123 = vld [vmem:[#allocation2 + $0x180] sm:$0xff]
    %v124 = vld [vmem:[#allocation2 + $0x188] sm:$0xff]
    %v125 = vld [vmem:[#allocation2 + $0x190] sm:$0xff]
    %v126 = vld [vmem:[#allocation2 + $0x198] sm:$0xff]
    %v127 = vld [vmem:[#allocation2 + $0x1a0] sm:$0xff]
    %v128 = vld [vmem:[#allocation2 + $0x1a8] sm:$0xff]
    %v129 = vld [vmem:[#allocation2 + $0x1b0] sm:$0xff]
    %v130 = vld [vmem:[#allocation2 + $0x1b8] sm:$0xff]
    %v131 = vld [vmem:[#allocation2 + $0x1c0] sm:$0xff]
    %v132 = vld [vmem:[#allocation2 + $0x1c8] sm:$0xff]
    %v133 = vld [vmem:[#allocation2 + $0x1d0] sm:$0xff]
    %v134 = vld [vmem:[#allocation2 + $0x1d8] sm:$0xff]
    %v135 = vld [vmem:[#allocation2 + $0x1e0] sm:$0xff]
    %v136 = vld [vmem:[#allocation2 + $0x1e8] sm:$0xff]
    %v137 = vld [vmem:[#allocation2 + $0x1f0] sm:$0xff]
    %v138 = vld [vmem:[#allocation2 + $0x1f8] sm:$0xff]
    %v139 = vld [vmem:[#allocation2 + $0x200] sm:$0xff]
    %v140 = vld [vmem:[#allocation2 + $0x208] sm:$0xff]
    %v141 = vld [vmem:[#allocation2 + $0x210] sm:$0xff]
    %v142 = vld [vmem:[#allocation2 + $0x218] sm:$0xff]
    %v143 = vld [vmem:[#allocation2 + $0x220] sm:$0xff]
    %v144 = vld [vmem:[#allocation2 + $0x228] sm:$0xff]
    %v145 = vld [vmem:[#allocation2 + $0x230] sm:$0xff]
    %v146 = vld [vmem:[#allocation2 + $0x238] sm:$0xff]
    %v147 = vld [vmem:[#allocation2 + $0x240] sm:$0xff]
    %v148 = vld [vmem:[#allocation2 + $0x248] sm:$0xff]
    %v149 = vld [vmem:[#allocation2 + $0x250] sm:$0xff]
    %v150 = vld [vmem:[#allocation2 + $0x258] sm:$0xff]
    %v151 = vld [vmem:[#allocation2 + $0x260] sm:$0xff]
    %v152 = vld [vmem:[#allocation2 + $0x268] sm:$0xff]
    %v153 = vld [vmem:[#allocation2 + $0x270] sm:$0xff]
    %v154 = vld [vmem:[#allocation2 + $0x278] sm:$0xff]
    %v155 = vld [vmem:[#allocation2 + $0x280] sm:$0xff]
    %v156 = vld [vmem:[#allocation2 + $0x288] sm:$0xff]
    %v157 = vld [vmem:[#allocation2 + $0x290] sm:$0xff]
    %v158 = vld [vmem:[#allocation2 + $0x298] sm:$0xff]
    %v159 = vld [vmem:[#allocation2 + $0x2a0] sm:$0xff]
    %v160 = vld [vmem:[#allocation2 + $0x2a8] sm:$0xff]
    %v161 = vld [vmem:[#allocation2 + $0x2b0] sm:$0xff]
    %v162 = vld [vmem:[#allocation2 + $0x2b8] sm:$0xff]
    %v163 = vld [vmem:[#allocation2 + $0x2c0] sm:$0xff]
    %v164 = vld [vmem:[#allocation2 + $0x2c8] sm:$0xff]
    %v165 = vld [vmem:[#allocation2 + $0x2d0] sm:$0xff]
    %v166 = vld [vmem:[#allocation2 + $0x2d8] sm:$0xff]
    %v167 = vld [vmem:[#allocation2 + $0x2e0] sm:$0xff]
    %v168 = vld [vmem:[#allocation2 + $0x2e8] sm:$0xff]
    %v169 = vld [vmem:[#allocation2 + $0x2f0] sm:$0xff]
    %v170 = vld [vmem:[#allocation2 + $0x2f8] sm:$0xff]
    %v171 = vld [vmem:[#allocation2 + $0x300] sm:$0xff]
    %v172 = vld [vmem:[#allocation2 + $0x308] sm:$0xff]
    %v173 = vld [vmem:[#allocation2 + $0x310] sm:$0xff]
    %v174 = vld [vmem:[#allocation2 + $0x318] sm:$0xff]
    %v175 = vld [vmem:[#allocation2 + $0x320] sm:$0xff]
    %v176 = vld [vmem:[#allocation2 + $0x328] sm:$0xff]
    %v177 = vld [vmem:[#allocation2 + $0x330] sm:$0xff]
    %v178 = vld [vmem:[#allocation2 + $0x338] sm:$0xff]
    %v179 = vld [vmem:[#allocation2 + $0x340] sm:$0xff]
    %v180 = vld [vmem:[#allocation2 + $0x348] sm:$0xff]
    %v181 = vld [vmem:[#allocation2 + $0x350] sm:$0xff]
    %v182 = vld [vmem:[#allocation2 + $0x358] sm:$0xff]
    %v183 = vld [vmem:[#allocation2 + $0x360] sm:$0xff]
    %v184 = vld [vmem:[#allocation2 + $0x368] sm:$0xff]
    %v185 = vld [vmem:[#allocation2 + $0x370] sm:$0xff]
    %v186 = vld [vmem:[#allocation2 + $0x378] sm:$0xff]
    %v187 = vld [vmem:[#allocation2 + $0x380] sm:$0xff]
    %v188 = vld [vmem:[#allocation2 + $0x388] sm:$0xff]
    %v189 = vld [vmem:[#allocation2 + $0x390] sm:$0xff]
    %v190 = vld [vmem:[#allocation2 + $0x398] sm:$0xff]
    %v191 = vld [vmem:[#allocation2 + $0x3a0] sm:$0xff]
    %v192 = vld [vmem:[#allocation2 + $0x3a8] sm:$0xff]
    %v193 = vld [vmem:[#allocation2 + $0x3b0] sm:$0xff]
    %v194 = vld [vmem:[#allocation2 + $0x3b8] sm:$0xff]
    %v195 = vld [vmem:[#allocation2 + $0x3c0] sm:$0xff]
    %v196 = vld [vmem:[#allocation2 + $0x3c8] sm:$0xff]
    %v197 = vld [vmem:[#allocation2 + $0x3d0] sm:$0xff]
    %v198 = vld [vmem:[#allocation2 + $0x3d8] sm:$0xff]
    %v199 = vld [vmem:[#allocation2 + $0x3e0] sm:$0xff]
    %v200 = vld [vmem:[#allocation2 + $0x3e8] sm:$0xff]
    %v201 = vld [vmem:[#allocation2 + $0x3f0] sm:$0xff]
    %v202 = vld [vmem:[#allocation2 + $0x3f8] sm:$0xff]
    %v203 = vld [vmem:[#allocation2 + $0x400] sm:$0xff]
    %v204 = vld [vmem:[#allocation2 + $0x408] sm:$0xff]
    %v205 = vld [vmem:[#allocation2 + $0x410] sm:$0xff]
    %v206 = vld [vmem:[#allocation2 + $0x418] sm:$0xff]
    %v207 = vld [vmem:[#allocation2 + $0x420] sm:$0xff]
    %v208 = vld [vmem:[#allocation2 + $0x428] sm:$0xff]
    %v209 = vld [vmem:[#allocation2 + $0x430] sm:$0xff]
    %v210 = vld [vmem:[#allocation2 + $0x438] sm:$0xff]
    %v211 = vld [vmem:[#allocation2 + $0x440] sm:$0xff]
    %v212 = vld [vmem:[#allocation2 + $0x448] sm:$0xff]
    %v213 = vld [vmem:[#allocation2 + $0x450] sm:$0xff]
    %v214 = vld [vmem:[#allocation2 + $0x458] sm:$0xff]
    %v215 = vld [vmem:[#allocation2 + $0x460] sm:$0xff]
    %v216 = vld [vmem:[#allocation2 + $0x468] sm:$0xff]
    %v217 = vld [vmem:[#allocation2 + $0x470] sm:$0xff]
    %v218 = vld [vmem:[#allocation2 + $0x478] sm:$0xff]
    %v219 = vld [vmem:[#allocation2 + $0x480] sm:$0xff]
    %v220 = vld [vmem:[#allocation2 + $0x488] sm:$0xff]
    %v221 = vld [vmem:[#allocation2 + $0x490] sm:$0xff]
    %v222 = vld [vmem:[#allocation2 + $0x498] sm:$0xff]
    %v223 = vld [vmem:[#allocation2 + $0x4a0] sm:$0xff]
    %v224 = vld [vmem:[#allocation2 + $0x4a8] sm:$0xff]
    %v225 = vld [vmem:[#allocation2 + $0x4b0] sm:$0xff]
    %v226 = vld [vmem:[#allocation2 + $0x4b8] sm:$0xff]
    %v227 = vld [vmem:[#allocation2 + $0x4c0] sm:$0xff]
    %v228 = vld [vmem:[#allocation2 + $0x4c8] sm:$0xff]
    %v229 = vld [vmem:[#allocation2 + $0x4d0] sm:$0xff]
    %v230 = vld [vmem:[#allocation2 + $0x4d8] sm:$0xff]
    %v231 = vld [vmem:[#allocation2 + $0x4e0] sm:$0xff]
    %v232 = vld [vmem:[#allocation2 + $0x4e8] sm:$0xff]
    %v233 = vld [vmem:[#allocation2 + $0x4f0] sm:$0xff]
    %v234 = vld [vmem:[#allocation2 + $0x4f8] sm:$0xff]
    %v235 = vld [vmem:[#allocation2 + $0x500] sm:$0xff]
    %v236 = vld [vmem:[#allocation2 + $0x508] sm:$0xff]
    %v237 = vld [vmem:[#allocation2 + $0x510] sm:$0xff]
    %v238 = vld [vmem:[#allocation2 + $0x518] sm:$0xff]
    %v239 = vld [vmem:[#allocation2 + $0x520] sm:$0xff]
    %v240 = vld [vmem:[#allocation2 + $0x528] sm:$0xff]
    %v241 = vld [vmem:[#allocation2 + $0x530] sm:$0xff]
    %v242 = vld [vmem:[#allocation2 + $0x538] sm:$0xff]
    %v243 = vld [vmem:[#allocation2 + $0x540] sm:$0xff]
    %v244 = vld [vmem:[#allocation2 + $0x548] sm:$0xff]
    %v245 = vld [vmem:[#allocation2 + $0x550] sm:$0xff]
    %v246 = vld [vmem:[#allocation2 + $0x558] sm:$0xff]
    %v247 = vld [vmem:[#allocation2 + $0x560] sm:$0xff]
    %v248 = vld [vmem:[#allocation2 + $0x568] sm:$0xff]
    %v249 = vld [vmem:[#allocation2 + $0x570] sm:$0xff]
    %v250 = vld [vmem:[#allocation2 + $0x578] sm:$0xff]
    %v251 = vld [vmem:[#allocation2 + $0x580] sm:$0xff]
    %v252 = vld [vmem:[#allocation2 + $0x588] sm:$0xff]
    %v253 = vld [vmem:[#allocation2 + $0x590] sm:$0xff]
    %v254 = vld [vmem:[#allocation2 + $0x598] sm:$0xff]
    %v255 = vld [vmem:[#allocation2 + $0x5a0] sm:$0xff]
    %v256 = vld [vmem:[#allocation2 + $0x5a8] sm:$0xff]
    %v257 = vld [vmem:[#allocation2 + $0x5b0] sm:$0xff]
    %v258 = vld [vmem:[#allocation2 + $0x5b8] sm:$0xff]
    %v259 = vld [vmem:[#allocation2 + $0x5c0] sm:$0xff]
    %v260 = vld [vmem:[#allocation2 + $0x5c8] sm:$0xff]
    %v261 = vld [vmem:[#allocation2 + $0x5d0] sm:$0xff]
    %v262 = vld [vmem:[#allocation2 + $0x5d8] sm:$0xff]
    %v263 = vld [vmem:[#allocation2 + $0x5e0] sm:$0xff]
    %v264 = vld [vmem:[#allocation2 + $0x5e8] sm:$0xff]
    %v265 = vld [vmem:[#allocation2 + $0x5f0] sm:$0xff]
    %v266 = vld [vmem:[#allocation2 + $0x5f8] sm:$0xff]
    %v267 = vld [vmem:[#allocation2 + $0x600] sm:$0xff]
    %v268 = vld [vmem:[#allocation2 + $0x608] sm:$0xff]
    %v269 = vld [vmem:[#allocation2 + $0x610] sm:$0xff]
    %v270 = vld [vmem:[#allocation2 + $0x618] sm:$0xff]
    %v271 = vld [vmem:[#allocation2 + $0x620] sm:$0xff]
    %v272 = vld [vmem:[#allocation2 + $0x628] sm:$0xff]
    %v273 = vld [vmem:[#allocation2 + $0x630] sm:$0xff]
    %v274 = vld [vmem:[#allocation2 + $0x638] sm:$0xff]
    %v275 = vld [vmem:[#allocation5] sm:$0xff]
    %v276 = vld [vmem:[#allocation5 + $0x8] sm:$0xff]
    %v277 = vld [vmem:[#allocation5 + $0x10] sm:$0xff]
    %v278 = vld [vmem:[#allocation5 + $0x18] sm:$0xff]
    %v279 = vld [vmem:[#allocation5 + $0x20] sm:$0xff]
    %v280 = vld [vmem:[#allocation5 + $0x28] sm:$0xff]
    %v281 = vld [vmem:[#allocation5 + $0x30] sm:$0xff]
    %v282 = vld [vmem:[#allocation5 + $0x38] sm:$0xff]
    %v283 = vld [vmem:[#allocation5 + $0x40] sm:$0xff]
    %v284 = vld [vmem:[#allocation5 + $0x48] sm:$0xff]
    %v285 = vld [vmem:[#allocation5 + $0x50] sm:$0xff]
    %v286 = vld [vmem:[#allocation5 + $0x58] sm:$0xff]
    %v287 = vld [vmem:[#allocation5 + $0x60] sm:$0xff]
    %v288 = vld [vmem:[#allocation5 + $0x68] sm:$0xff]
    %v289 = vld [vmem:[#allocation5 + $0x70] sm:$0xff]
    %v290 = vld [vmem:[#allocation5 + $0x78] sm:$0xff]
    %v291 = vld [vmem:[#allocation5 + $0x80] sm:$0xff]
    %v292 = vld [vmem:[#allocation5 + $0x88] sm:$0xff]
    %v293 = vld [vmem:[#allocation5 + $0x90] sm:$0xff]
    %v294 = vld [vmem:[#allocation5 + $0x98] sm:$0xff]
    %v295 = vld [vmem:[#allocation5 + $0xa0] sm:$0xff]
    %v296 = vld [vmem:[#allocation5 + $0xa8] sm:$0xff]
    %v297 = vld [vmem:[#allocation5 + $0xb0] sm:$0xff]
    %v298 = vld [vmem:[#allocation5 + $0xb8] sm:$0xff]
    %v299 = vld [vmem:[#allocation5 + $0xc0] sm:$0xff]
    %v300 = vld [vmem:[#allocation5 + $0xc8] sm:$0xff]
    %v301 = vld [vmem:[#allocation5 + $0xd0] sm:$0xff]
    %v302 = vld [vmem:[#allocation5 + $0xd8] sm:$0xff]
    %v303 = vld [vmem:[#allocation5 + $0xe0] sm:$0xff]
    %v304 = vld [vmem:[#allocation5 + $0xe8] sm:$0xff]
    %v305 = vld [vmem:[#allocation5 + $0xf0] sm:$0xff]
    %v306 = vld [vmem:[#allocation5 + $0xf8] sm:$0xff]
    %v307 = vld [vmem:[#allocation5 + $0x100] sm:$0xff]
    %v308 = vld [vmem:[#allocation5 + $0x108] sm:$0xff]
    %v309 = vld [vmem:[#allocation5 + $0x110] sm:$0xff]
    %v310 = vld [vmem:[#allocation5 + $0x118] sm:$0xff]
    %v311 = vld [vmem:[#allocation5 + $0x120] sm:$0xff]
    %v312 = vld [vmem:[#allocation5 + $0x128] sm:$0xff]
    %v313 = vld [vmem:[#allocation5 + $0x130] sm:$0xff]
    %v314 = vld [vmem:[#allocation5 + $0x138] sm:$0xff]
    %v315 = vld [vmem:[#allocation5 + $0x140] sm:$0xff]
    %v316 = vld [vmem:[#allocation5 + $0x148] sm:$0xff]
    %v317 = vld [vmem:[#allocation5 + $0x150] sm:$0xff]
    %v318 = vld [vmem:[#allocation5 + $0x158] sm:$0xff]
    %v319 = vld [vmem:[#allocation5 + $0x160] sm:$0xff]
    %v320 = vld [vmem:[#allocation5 + $0x168] sm:$0xff]
    %v321 = vld [vmem:[#allocation5 + $0x170] sm:$0xff]
    %v322 = vld [vmem:[#allocation5 + $0x178] sm:$0xff]
    %v323 = vld [vmem:[#allocation5 + $0x180] sm:$0xff]
    %v324 = vld [vmem:[#allocation5 + $0x188] sm:$0xff]
    %v325 = vld [vmem:[#allocation5 + $0x190] sm:$0xff]
    %v326 = vld [vmem:[#allocation5 + $0x198] sm:$0xff]
    %v327 = vld [vmem:[#allocation5 + $0x1a0] sm:$0xff]
    %v328 = vld [vmem:[#allocation5 + $0x1a8] sm:$0xff]
    %v329 = vld [vmem:[#allocation5 + $0x1b0] sm:$0xff]
    %v330 = vld [vmem:[#allocation5 + $0x1b8] sm:$0xff]
    %v331 = vld [vmem:[#allocation5 + $0x1c0] sm:$0xff]
    %v332 = vld [vmem:[#allocation5 + $0x1c8] sm:$0xff]
    %v333 = vld [vmem:[#allocation5 + $0x1d0] sm:$0xff]
    %v334 = vld [vmem:[#allocation5 + $0x1d8] sm:$0xff]
    %v335 = vld [vmem:[#allocation5 + $0x1e0] sm:$0xff]
    %v336 = vld [vmem:[#allocation5 + $0x1e8] sm:$0xff]
    %v337 = vld [vmem:[#allocation5 + $0x1f0] sm:$0xff]
    %v338 = vld [vmem:[#allocation5 + $0x1f8] sm:$0xff]
    %v339 = vld [vmem:[#allocation5 + $0x200] sm:$0xff]
    %v340 = vld [vmem:[#allocation5 + $0x208] sm:$0xff]
    %v341 = vld [vmem:[#allocation5 + $0x210] sm:$0xff]
    %v342 = vld [vmem:[#allocation5 + $0x218] sm:$0xff]
    %v343 = vld [vmem:[#allocation5 + $0x220] sm:$0xff]
    %v344 = vld [vmem:[#allocation5 + $0x228] sm:$0xff]
    %v345 = vld [vmem:[#allocation5 + $0x230] sm:$0xff]
    %v346 = vld [vmem:[#allocation5 + $0x238] sm:$0xff]
    %v347 = vld [vmem:[#allocation5 + $0x240] sm:$0xff]
    %v348 = vld [vmem:[#allocation5 + $0x248] sm:$0xff]
    %v349 = vld [vmem:[#allocation5 + $0x250] sm:$0xff]
    %v350 = vld [vmem:[#allocation5 + $0x258] sm:$0xff]
    %v351 = vld [vmem:[#allocation5 + $0x260] sm:$0xff]
    %v352 = vld [vmem:[#allocation5 + $0x268] sm:$0xff]
    %v353 = vld [vmem:[#allocation5 + $0x270] sm:$0xff]
    %v354 = vld [vmem:[#allocation5 + $0x278] sm:$0xff]
    %v355 = vld [vmem:[#allocation5 + $0x280] sm:$0xff]
    %v356 = vld [vmem:[#allocation5 + $0x288] sm:$0xff]
    %v357 = vld [vmem:[#allocation5 + $0x290] sm:$0xff]
    %v358 = vld [vmem:[#allocation5 + $0x298] sm:$0xff]
    %v359 = vld [vmem:[#allocation5 + $0x2a0] sm:$0xff]
    %v360 = vld [vmem:[#allocation5 + $0x2a8] sm:$0xff]
    %v361 = vld [vmem:[#allocation5 + $0x2b0] sm:$0xff]
    %v362 = vld [vmem:[#allocation5 + $0x2b8] sm:$0xff]
    %v363 = vld [vmem:[#allocation5 + $0x2c0] sm:$0xff]
    %v364 = vld [vmem:[#allocation5 + $0x2c8] sm:$0xff]
    %v365 = vld [vmem:[#allocation5 + $0x2d0] sm:$0xff]
    %v366 = vld [vmem:[#allocation5 + $0x2d8] sm:$0xff]
    %v367 = vld [vmem:[#allocation5 + $0x2e0] sm:$0xff]
    %v368 = vld [vmem:[#allocation5 + $0x2e8] sm:$0xff]
    %v369 = vld [vmem:[#allocation5 + $0x2f0] sm:$0xff]
    %v370 = vld [vmem:[#allocation5 + $0x2f8] sm:$0xff]
    %v371 = vld [vmem:[#allocation5 + $0x300] sm:$0xff]
    %v372 = vld [vmem:[#allocation5 + $0x308] sm:$0xff]
    %v373 = vld [vmem:[#allocation5 + $0x310] sm:$0xff]
    %v374 = vld [vmem:[#allocation5 + $0x318] sm:$0xff]
    %v375 = vld [vmem:[#allocation5 + $0x320] sm:$0xff]
    %v376 = vld [vmem:[#allocation5 + $0x328] sm:$0xff]
    %v377 = vld [vmem:[#allocation5 + $0x330] sm:$0xff]
    %v378 = vld [vmem:[#allocation5 + $0x338] sm:$0xff]
    %v379 = vld [vmem:[#allocation5 + $0x340] sm:$0xff]
    %v380 = vld [vmem:[#allocation5 + $0x348] sm:$0xff]
    %v381 = vld [vmem:[#allocation5 + $0x350] sm:$0xff]
    %v382 = vld [vmem:[#allocation5 + $0x358] sm:$0xff]
    %v383 = vld [vmem:[#allocation5 + $0x360] sm:$0xff]
    %v384 = vld [vmem:[#allocation5 + $0x368] sm:$0xff]
    %v385 = vld [vmem:[#allocation5 + $0x370] sm:$0xff]
    %v386 = vld [vmem:[#allocation5 + $0x378] sm:$0xff]
    %v387 = vld [vmem:[#allocation5 + $0x380] sm:$0xff]
    %v388 = vld [vmem:[#allocation5 + $0x388] sm:$0xff]
    %v389 = vld [vmem:[#allocation5 + $0x390] sm:$0xff]
    %v390 = vld [vmem:[#allocation5 + $0x398] sm:$0xff]
    %v391 = vld [vmem:[#allocation5 + $0x3a0] sm:$0xff]
    %v392 = vld [vmem:[#allocation5 + $0x3a8] sm:$0xff]
    %v393 = vld [vmem:[#allocation5 + $0x3b0] sm:$0xff]
    %v394 = vld [vmem:[#allocation5 + $0x3b8] sm:$0xff]
    %v395 = vld [vmem:[#allocation5 + $0x3c0] sm:$0xff]
    %v396 = vld [vmem:[#allocation5 + $0x3c8] sm:$0xff]
    %v397 = vld [vmem:[#allocation5 + $0x3d0] sm:$0xff]
    %v398 = vld [vmem:[#allocation5 + $0x3d8] sm:$0xff]
    %v399 = vld [vmem:[#allocation5 + $0x3e0] sm:$0xff]
    %v400 = vld [vmem:[#allocation5 + $0x3e8] sm:$0xff]
    %v401 = vld [vmem:[#allocation5 + $0x3f0] sm:$0xff]
    %v402 = vld [vmem:[#allocation5 + $0x3f8] sm:$0xff]
    %v403 = vld [vmem:[#allocation5 + $0x400] sm:$0xff]
    %v404 = vld [vmem:[#allocation5 + $0x408] sm:$0xff]
    %v405 = vld [vmem:[#allocation5 + $0x410] sm:$0xff]
    %v406 = vld [vmem:[#allocation5 + $0x418] sm:$0xff]
    %v407 = vld [vmem:[#allocation5 + $0x420] sm:$0xff]
    %v408 = vld [vmem:[#allocation5 + $0x428] sm:$0xff]
    %v409 = vld [vmem:[#allocation5 + $0x430] sm:$0xff]
    %v410 = vld [vmem:[#allocation5 + $0x438] sm:$0xff]
    %v411 = vld [vmem:[#allocation5 + $0x440] sm:$0xff]
    %v412 = vld [vmem:[#allocation5 + $0x448] sm:$0xff]
    %v413 = vld [vmem:[#allocation5 + $0x450] sm:$0xff]
    %v414 = vld [vmem:[#allocation5 + $0x458] sm:$0xff]
    %v415 = vld [vmem:[#allocation5 + $0x460] sm:$0xff]
    %v416 = vld [vmem:[#allocation5 + $0x468] sm:$0xff]
    %v417 = vld [vmem:[#allocation5 + $0x470] sm:$0xff]
    %v418 = vld [vmem:[#allocation5 + $0x478] sm:$0xff]
    %v419 = vld [vmem:[#allocation5 + $0x480] sm:$0xff]
    %v420 = vld [vmem:[#allocation5 + $0x488] sm:$0xff]
    %v421 = vld [vmem:[#allocation5 + $0x490] sm:$0xff]
    %v422 = vld [vmem:[#allocation5 + $0x498] sm:$0xff]
    %v423 = vld [vmem:[#allocation5 + $0x4a0] sm:$0xff]
    %v424 = vld [vmem:[#allocation5 + $0x4a8] sm:$0xff]
    %v425 = vld [vmem:[#allocation5 + $0x4b0] sm:$0xff]
    %v426 = vld [vmem:[#allocation5 + $0x4b8] sm:$0xff]
    %v427 = vld [vmem:[#allocation5 + $0x4c0] sm:$0xff]
    %v428 = vld [vmem:[#allocation5 + $0x4c8] sm:$0xff]
    %v429 = vld [vmem:[#allocation5 + $0x4d0] sm:$0xff]
    %v430 = vld [vmem:[#allocation5 + $0x4d8] sm:$0xff]
    %v431 = vld [vmem:[#allocation5 + $0x4e0] sm:$0xff]
    %v432 = vld [vmem:[#allocation5 + $0x4e8] sm:$0xff]
    %v433 = vld [vmem:[#allocation5 + $0x4f0] sm:$0xff]
    %v434 = vld [vmem:[#allocation5 + $0x4f8] sm:$0xff]
    %v435 = vld [vmem:[#allocation5 + $0x500] sm:$0xff]
    %v436 = vld [vmem:[#allocation5 + $0x508] sm:$0xff]
    %v437 = vld [vmem:[#allocation5 + $0x510] sm:$0xff]
    %v438 = vld [vmem:[#allocation5 + $0x518] sm:$0xff]
    %v439 = vld [vmem:[#allocation5 + $0x520] sm:$0xff]
    %v440 = vld [vmem:[#allocation5 + $0x528] sm:$0xff]
    %v441 = vld [vmem:[#allocation5 + $0x530] sm:$0xff]
    %v442 = vld [vmem:[#allocation5 + $0x538] sm:$0xff]
    %v443 = vld [vmem:[#allocation5 + $0x540] sm:$0xff]
    %v444 = vld [vmem:[#allocation5 + $0x548] sm:$0xff]
    %v445 = vld [vmem:[#allocation5 + $0x550] sm:$0xff]
    %v446 = vld [vmem:[#allocation5 + $0x558] sm:$0xff]
    %v447 = vld [vmem:[#allocation5 + $0x560] sm:$0xff]
    %v448 = vld [vmem:[#allocation5 + $0x568] sm:$0xff]
    %v449 = vld [vmem:[#allocation5 + $0x570] sm:$0xff]
    %v450 = vld [vmem:[#allocation5 + $0x578] sm:$0xff]
    %v451 = vld [vmem:[#allocation5 + $0x580] sm:$0xff]
    %v452 = vld [vmem:[#allocation5 + $0x588] sm:$0xff]
    %v453 = vld [vmem:[#allocation5 + $0x590] sm:$0xff]
    %v454 = vld [vmem:[#allocation5 + $0x598] sm:$0xff]
    %v455 = vld [vmem:[#allocation5 + $0x5a0] sm:$0xff]
    %v456 = vld [vmem:[#allocation5 + $0x5a8] sm:$0xff]
    %v457 = vld [vmem:[#allocation5 + $0x5b0] sm:$0xff]
    %v458 = vld [vmem:[#allocation5 + $0x5b8] sm:$0xff]
    %v459 = vld [vmem:[#allocation5 + $0x5c0] sm:$0xff]
    %v460 = vld [vmem:[#allocation5 + $0x5c8] sm:$0xff]
    %v461 = vld [vmem:[#allocation5 + $0x5d0] sm:$0xff]
    %v462 = vld [vmem:[#allocation5 + $0x5d8] sm:$0xff]
    %v463 = vld [vmem:[#allocation5 + $0x5e0] sm:$0xff]
    %v464 = vld [vmem:[#allocation5 + $0x5e8] sm:$0xff]
    %v465 = vld [vmem:[#allocation5 + $0x5f0] sm:$0xff]
    %v466 = vld [vmem:[#allocation5 + $0x5f8] sm:$0xff]
    %v467 = vld [vmem:[#allocation5 + $0x600] sm:$0xff]
    %v468 = vld [vmem:[#allocation5 + $0x608] sm:$0xff]
    %v469 = vld [vmem:[#allocation5 + $0x610] sm:$0xff]
    %v470 = vld [vmem:[#allocation5 + $0x618] sm:$0xff]
    %v471 = vld [vmem:[#allocation5 + $0x620] sm:$0xff]
    %v472 = vld [vmem:[#allocation5 + $0x628] sm:$0xff]
    %v473 = vld [vmem:[#allocation5 + $0x630] sm:$0xff]
    %v474 = vld [vmem:[#allocation5 + $0x638] sm:$0xff]
    %v475 = vld [vmem:[%s4] sm:$0xf]
    %v476 = vadd.f32 %v73, %v74
    %v477 = vmul.f32 %v476, 0.5
    %v478 = vsub.f32 %v74, %v73
    %v479 = vmul.f32 %v478, 0.5
    %v481 = vlaneseq
    %v482 = vshrl.u32 %v481, 7
    %v483 = vsub.s32 0, %v482
    %v484 = vrot.slane %v475, %v483
    %v485 = vlaneseq
    %v486 = vshrl.u32 %v485, 7
    %v487 = vsub.s32 1, %v486
    %v488 = vrot.slane %v475, %v487
    %v489 = vlaneseq
    %v490 = vshrl.u32 %v489, 7
    %v491 = vsub.s32 2, %v490
    %v492 = vrot.slane %v475, %v491
    %v493 = vlaneseq
    %v494 = vshrl.u32 %v493, 7
    %v495 = vsub.s32 3, %v494
    %v496 = vrot.slane %v475, %v495
    %v502 = vcombine.high %v477, %v477
    %v504 = vunpack.c.l.s4 1983009808
    %v505 = vunpack.c.0.s8 %v504
    %v506 = vlaneseq
    %v507 = vshrl.u32 %v506, 7
    %v508 = vsub.s32 %v505, %v507
    %v509 = vrot.slane %v477, %v508
    %v511 = vunpack.c.l.s4 1983009808
    %v512 = vunpack.c.0.s8 %v511
    %v513 = vlaneseq
    %v514 = vshrl.u32 %v513, 7
    %v515 = vsub.s32 %v512, %v514
    %v516 = vrot.slane %v502, %v515
    %v517 = vcombine.high %v509, %v509
    %v518 = vcombine.high %v516, %v516
    %vm522 = vcmask 130048
    %v523 = vsel %vm522, %v518, 0
    %525 = vmatprep.subr.mxu0 %v76
    %526 = vmatpush1.msra.mxu0 %v75
    %527 = vmatprep.subr.mxu0 %v80
    %528 = vmatpush1.msra.mxu0 %v79
    %529 = vmatprep.subr.mxu0 %v84
    %530 = vmatpush1.msra.mxu0 %v83
    %531 = vmatprep.subr.mxu0 %v88
    %532 = vmatpush1.msra.mxu0 %v87
    %533 = vmatprep.subr.mxu0 %v92
    %534 = vmatpush1.msra.mxu0 %v91
    %535 = vmatprep.subr.mxu0 %v96
    %536 = vmatpush1.msra.mxu0 %v95
    %537 = vmatprep.subr.mxu0 %v100
    %538 = vmatpush1.msra.mxu0 %v99
    %539 = vmatprep.subr.mxu0 %v104
    %540 = vmatpush1.msra.mxu0 %v103
    %541 = vmatprep.subr.mxu0 %v108
    %542 = vmatpush1.msra.mxu0 %v107
    %543 = vmatprep.subr.mxu0 %v112
    %544 = vmatpush1.msra.mxu0 %v111
    %545 = vmatprep.subr.mxu0 %v116
    %546 = vmatpush1.msra.mxu0 %v115
    %547 = vmatprep.subr.mxu0 %v120
    %548 = vmatpush1.msra.mxu0 %v119
    %549 = vmatprep.subr.mxu0 %v124
    %550 = vmatpush1.msra.mxu0 %v123
    %551 = vmatprep.subr.mxu0 %v128
    %552 = vmatpush1.msra.mxu0 %v127
    %553 = vmatprep.subr.mxu0 %v132
    %554 = vmatpush1.msra.mxu0 %v131
    %555 = vmatprep.subr.mxu0 %v136
    %556 = vmatpush1.msra.mxu0 %v135
    %557 = vmatprep.subr.mxu0 %v140
    %558 = vmatpush1.msra.mxu0 %v139
    %559 = vmatprep.subr.mxu0 %v144
    %560 = vmatpush1.msra.mxu0 %v143
    %561 = vmatprep.subr.mxu0 %v148
    %562 = vmatpush1.msra.mxu0 %v147
    %563 = vmatprep.subr.mxu0 %v152
    %564 = vmatpush1.msra.mxu0 %v151
    %565 = vmatprep.subr.mxu0 %v156
    %566 = vmatpush1.msra.mxu0 %v155
    %567 = vmatprep.subr.mxu0 %v160
    %568 = vmatpush1.msra.mxu0 %v159
    %569 = vmatprep.subr.mxu0 %v164
    %570 = vmatpush1.msra.mxu0 %v163
    %571 = vmatprep.subr.mxu0 %v168
    %572 = vmatpush1.msra.mxu0 %v167
    %573 = vmatprep.subr.mxu0 %v172
    %574 = vmatpush1.msra.mxu0 %v171
    %575 = vmatprep.subr.mxu0 %v176
    %576 = vmatpush1.msra.mxu0 %v175
    %577 = vmatprep.subr.mxu0 %v180
    %578 = vmatpush1.msra.mxu0 %v179
    %579 = vmatprep.subr.mxu0 %v184
    %580 = vmatpush1.msra.mxu0 %v183
    %581 = vmatprep.subr.mxu0 %v188
    %582 = vmatpush1.msra.mxu0 %v187
    %583 = vmatprep.subr.mxu0 %v192
    %584 = vmatpush1.msra.mxu0 %v191
    %585 = vmatprep.subr.mxu0 %v196
    %586 = vmatpush1.msra.mxu0 %v195
    %587 = vmatprep.subr.mxu0 %v200
    %588 = vmatpush1.msra.mxu0 %v199
    %589 = vmatprep.mubr.f32.mxu0 %v517
    %590 = vmatmul.mubr.f32.gmra.mrb[0].mxu0 %v509
    %v591 = vpop.f32.mrb[0].mxu0
    %v592 = vadd.f32 %v484, %v591
    %v593 = vpop.f32.mrb[0].mxu0
    %v594 = vadd.f32 %v488, %v593
    %595 = vdwg.mxu0
    %596 = vmatprep.subr.mxu0 %v204
    %597 = vmatpush1.msra.mxu0 %v203
    %598 = vmatprep.subr.mxu0 %v208
    %599 = vmatpush1.msra.mxu0 %v207
    %600 = vmatprep.subr.mxu0 %v212
    %601 = vmatpush1.msra.mxu0 %v211
    %602 = vmatprep.subr.mxu0 %v216
    %603 = vmatpush1.msra.mxu0 %v215
    %604 = vmatprep.subr.mxu0 %v220
    %605 = vmatpush1.msra.mxu0 %v219
    %606 = vmatprep.subr.mxu0 %v224
    %607 = vmatpush1.msra.mxu0 %v223
    %608 = vmatprep.subr.mxu0 %v228
    %609 = vmatpush1.msra.mxu0 %v227
    %610 = vmatprep.subr.mxu0 %v232
    %611 = vmatpush1.msra.mxu0 %v231
    %612 = vmatprep.subr.mxu0 %v236
    %613 = vmatpush1.msra.mxu0 %v235
    %614 = vmatprep.subr.mxu0 %v240
    %615 = vmatpush1.msra.mxu0 %v239
    %616 = vmatprep.subr.mxu0 %v244
    %617 = vmatpush1.msra.mxu0 %v243
    %618 = vmatprep.subr.mxu0 %v248
    %619 = vmatpush1.msra.mxu0 %v247
    %620 = vmatprep.subr.mxu0 %v252
    %621 = vmatpush1.msra.mxu0 %v251
    %622 = vmatprep.subr.mxu0 %v256
    %623 = vmatpush1.msra.mxu0 %v255
    %624 = vmatprep.subr.mxu0 %v260
    %625 = vmatpush1.msra.mxu0 %v259
    %626 = vmatprep.subr.mxu0 %v264
    %627 = vmatpush1.msra.mxu0 %v263
    %628 = vmatprep.subr.mxu0 %v268
    %629 = vmatpush1.msra.mxu0 %v267
    %630 = vmatprep.subr.mxu0 %v272
    %631 = vmatpush1.msra.mxu0 %v271
    %632 = vmatprep.subr.mxu0 0.0
    %633 = vmatpush1.msra.mxu0 0.0
    %634 = vmatprep.subr.mxu0 0.0
    %635 = vmatpush1.msra.mxu0 0.0
    %636 = vmatprep.subr.mxu0 0.0
    %637 = vmatpush1.msra.mxu0 0.0
    %638 = vmatprep.subr.mxu0 0.0
    %639 = vmatpush1.msra.mxu0 0.0
    %640 = vmatprep.subr.mxu0 0.0
    %641 = vmatpush1.msra.mxu0 0.0
    %642 = vmatprep.subr.mxu0 0.0
    %643 = vmatpush1.msra.mxu0 0.0
    %644 = vmatprep.subr.mxu0 0.0
    %645 = vmatpush1.msra.mxu0 0.0
    %646 = vmatprep.subr.mxu0 0.0
    %647 = vmatpush1.msra.mxu0 0.0
    %648 = vmatprep.subr.mxu0 0.0
    %649 = vmatpush1.msra.mxu0 0.0
    %650 = vmatprep.subr.mxu0 0.0
    %651 = vmatpush1.msra.mxu0 0.0
    %652 = vmatprep.subr.mxu0 0.0
    %653 = vmatpush1.msra.mxu0 0.0
    %654 = vmatprep.subr.mxu0 0.0
    %655 = vmatpush1.msra.mxu0 0.0
    %656 = vmatprep.subr.mxu0 0.0
    %657 = vmatpush1.msra.mxu0 0.0
    %658 = vmatprep.subr.mxu0 0.0
    %659 = vmatpush1.msra.mxu0 0.0
    %660 = vmatprep.mubr.f32.mxu0 %v523
    %661 = vmatmul.mubr.f32.gmra.mrb[0].mxu0 %v516
    %v662 = vpop.f32.mrb[0].mxu0
    %v663 = vadd.f32 %v592, %v662
    %v664 = vpop.f32.mrb[0].mxu0
    %v665 = vadd.f32 %v594, %v664
    %666 = vdwg.mxu0
    %667 = vmatprep.subr.mxu0 %v78
    %668 = vmatpush1.msra.mxu0 %v77
    %669 = vmatprep.subr.mxu0 %v82
    %670 = vmatpush1.msra.mxu0 %v81
    %671 = vmatprep.subr.mxu0 %v86
    %672 = vmatpush1.msra.mxu0 %v85
    %673 = vmatprep.subr.mxu0 %v90
    %674 = vmatpush1.msra.mxu0 %v89
    %675 = vmatprep.subr.mxu0 %v94
    %676 = vmatpush1.msra.mxu0 %v93
    %677 = vmatprep.subr.mxu0 %v98
    %678 = vmatpush1.msra.mxu0 %v97
    %679 = vmatprep.subr.mxu0 %v102
    %680 = vmatpush1.msra.mxu0 %v101
    %681 = vmatprep.subr.mxu0 %v106
    %682 = vmatpush1.msra.mxu0 %v105
    %683 = vmatprep.subr.mxu0 %v110
    %684 = vmatpush1.msra.mxu0 %v109
    %685 = vmatprep.subr.mxu0 %v114
    %686 = vmatpush1.msra.mxu0 %v113
    %687 = vmatprep.subr.mxu0 %v118
    %688 = vmatpush1.msra.mxu0 %v117
    %689 = vmatprep.subr.mxu0 %v122
    %690 = vmatpush1.msra.mxu0 %v121
    %691 = vmatprep.subr.mxu0 %v126
    %692 = vmatpush1.msra.mxu0 %v125
    %693 = vmatprep.subr.mxu0 %v130
    %694 = vmatpush1.msra.mxu0 %v129
    %695 = vmatprep.subr.mxu0 %v134
    %696 = vmatpush1.msra.mxu0 %v133
    %697 = vmatprep.subr.mxu0 %v138
    %698 = vmatpush1.msra.mxu0 %v137
    %699 = vmatprep.subr.mxu0 %v142
    %700 = vmatpush1.msra.mxu0 %v141
    %701 = vmatprep.subr.mxu0 %v146
    %702 = vmatpush1.msra.mxu0 %v145
    %703 = vmatprep.subr.mxu0 %v150
    %704 = vmatpush1.msra.mxu0 %v149
    %705 = vmatprep.subr.mxu0 %v154
    %706 = vmatpush1.msra.mxu0 %v153
    %707 = vmatprep.subr.mxu0 %v158
    %708 = vmatpush1.msra.mxu0 %v157
    %709 = vmatprep.subr.mxu0 %v162
    %710 = vmatpush1.msra.mxu0 %v161
    %711 = vmatprep.subr.mxu0 %v166
    %712 = vmatpush1.msra.mxu0 %v165
    %713 = vmatprep.subr.mxu0 %v170
    %714 = vmatpush1.msra.mxu0 %v169
    %715 = vmatprep.subr.mxu0 %v174
    %716 = vmatpush1.msra.mxu0 %v173
    %717 = vmatprep.subr.mxu0 %v178
    %718 = vmatpush1.msra.mxu0 %v177
    %719 = vmatprep.subr.mxu0 %v182
    %720 = vmatpush1.msra.mxu0 %v181
    %721 = vmatprep.subr.mxu0 %v186
    %722 = vmatpush1.msra.mxu0 %v185
    %723 = vmatprep.subr.mxu0 %v190
    %724 = vmatpush1.msra.mxu0 %v189
    %725 = vmatprep.subr.mxu0 %v194
    %726 = vmatpush1.msra.mxu0 %v193
    %727 = vmatprep.subr.mxu0 %v198
    %728 = vmatpush1.msra.mxu0 %v197
    %729 = vmatprep.subr.mxu0 %v202
    %730 = vmatpush1.msra.mxu0 %v201
    %731 = vmatprep.mubr.f32.mxu0 %v517
    %732 = vmatmul.mubr.f32.gmra.mrb[0].mxu0 %v509
    %v733 = vpop.f32.mrb[0].mxu0
    %v734 = vadd.f32 %v492, %v733
    %v735 = vpop.f32.mrb[0].mxu0
    %v736 = vadd.f32 %v496, %v735
    %737 = vdwg.mxu0
    %738 = vmatprep.subr.mxu0 %v206
    %739 = vmatpush1.msra.mxu0 %v205
    %740 = vmatprep.subr.mxu0 %v210
    %741 = vmatpush1.msra.mxu0 %v209
    %742 = vmatprep.subr.mxu0 %v214
    %743 = vmatpush1.msra.mxu0 %v213
    %744 = vmatprep.subr.mxu0 %v218
    %745 = vmatpush1.msra.mxu0 %v217
    %746 = vmatprep.subr.mxu0 %v222
    %747 = vmatpush1.msra.mxu0 %v221
    %748 = vmatprep.subr.mxu0 %v226
    %749 = vmatpush1.msra.mxu0 %v225
    %750 = vmatprep.subr.mxu0 %v230
    %751 = vmatpush1.msra.mxu0 %v229
    %752 = vmatprep.subr.mxu0 %v234
    %753 = vmatpush1.msra.mxu0 %v233
    %754 = vmatprep.subr.mxu0 %v238
    %755 = vmatpush1.msra.mxu0 %v237
    %756 = vmatprep.subr.mxu0 %v242
    %757 = vmatpush1.msra.mxu0 %v241
    %758 = vmatprep.subr.mxu0 %v246
    %759 = vmatpush1.msra.mxu0 %v245
    %760 = vmatprep.subr.mxu0 %v250
    %761 = vmatpush1.msra.mxu0 %v249
    %762 = vmatprep.subr.mxu0 %v254
    %763 = vmatpush1.msra.mxu0 %v253
    %764 = vmatprep.subr.mxu0 %v258
    %765 = vmatpush1.msra.mxu0 %v257
    %766 = vmatprep.subr.mxu0 %v262
    %767 = vmatpush1.msra.mxu0 %v261
    %768 = vmatprep.subr.mxu0 %v266
    %769 = vmatpush1.msra.mxu0 %v265
    %770 = vmatprep.subr.mxu0 %v270
    %771 = vmatpush1.msra.mxu0 %v269
    %772 = vmatprep.subr.mxu0 %v274
    %773 = vmatpush1.msra.mxu0 %v273
    %774 = vmatprep.subr.mxu0 0.0
    %775 = vmatpush1.msra.mxu0 0.0
    %776 = vmatprep.subr.mxu0 0.0
    %777 = vmatpush1.msra.mxu0 0.0
    %778 = vmatprep.subr.mxu0 0.0
    %779 = vmatpush1.msra.mxu0 0.0
    %780 = vmatprep.subr.mxu0 0.0
    %781 = vmatpush1.msra.mxu0 0.0
    %782 = vmatprep.subr.mxu0 0.0
    %783 = vmatpush1.msra.mxu0 0.0
    %784 = vmatprep.subr.mxu0 0.0
    %785 = vmatpush1.msra.mxu0 0.0
    %786 = vmatprep.subr.mxu0 0.0
    %787 = vmatpush1.msra.mxu0 0.0
    %788 = vmatprep.subr.mxu0 0.0
    %789 = vmatpush1.msra.mxu0 0.0
    %790 = vmatprep.subr.mxu0 0.0
    %791 = vmatpush1.msra.mxu0 0.0
    %792 = vmatprep.subr.mxu0 0.0
    %793 = vmatpush1.msra.mxu0 0.0
    %794 = vmatprep.subr.mxu0 0.0
    %795 = vmatpush1.msra.mxu0 0.0
    %796 = vmatprep.subr.mxu0 0.0
    %797 = vmatpush1.msra.mxu0 0.0
    %798 = vmatprep.subr.mxu0 0.0
    %799 = vmatpush1.msra.mxu0 0.0
    %800 = vmatprep.subr.mxu0 0.0
    %801 = vmatpush1.msra.mxu0 0.0
    %802 = vmatprep.mubr.f32.mxu0 %v523
    %803 = vmatmul.mubr.f32.gmra.mrb[0].mxu0 %v516
    %v804 = vpop.f32.mrb[0].mxu0
    %v805 = vadd.f32 %v734, %v804
    %v806 = vpop.f32.mrb[0].mxu0
    %v807 = vadd.f32 %v736, %v806
    %808 = vdwg.mxu0
    %v810 = vcombine.high %v479, %v479
    %v812 = vunpack.c.l.s4 1983009808
    %v813 = vunpack.c.0.s8 %v812
    %v814 = vlaneseq
    %v815 = vshrl.u32 %v814, 7
    %v816 = vsub.s32 %v813, %v815
    %v817 = vrot.slane %v479, %v816
    %v819 = vunpack.c.l.s4 1983009808
    %v820 = vunpack.c.0.s8 %v819
    %v821 = vlaneseq
    %v822 = vshrl.u32 %v821, 7
    %v823 = vsub.s32 %v820, %v822
    %v824 = vrot.slane %v810, %v823
    %v825 = vcombine.high %v817, %v817
    %v826 = vcombine.high %v824, %v824
    %v830 = vsel %vm522, %v826, 0
    %832 = vmatprep.subr.mxu0 %v276
    %833 = vmatpush1.msra.mxu0 %v275
    %834 = vmatprep.subr.mxu0 %v280
    %835 = vmatpush1.msra.mxu0 %v279
    %836 = vmatprep.subr.mxu0 %v284
    %837 = vmatpush1.msra.mxu0 %v283
    %838 = vmatprep.subr.mxu0 %v288
    %839 = vmatpush1.msra.mxu0 %v287
    %840 = vmatprep.subr.mxu0 %v292
    %841 = vmatpush1.msra.mxu0 %v291
    %842 = vmatprep.subr.mxu0 %v296
    %843 = vmatpush1.msra.mxu0 %v295
    %844 = vmatprep.subr.mxu0 %v300
    %845 = vmatpush1.msra.mxu0 %v299
    %846 = vmatprep.subr.mxu0 %v304
    %847 = vmatpush1.msra.mxu0 %v303
    %848 = vmatprep.subr.mxu0 %v308
    %849 = vmatpush1.msra.mxu0 %v307
    %850 = vmatprep.subr.mxu0 %v312
    %851 = vmatpush1.msra.mxu0 %v311
    %852 = vmatprep.subr.mxu0 %v316
    %853 = vmatpush1.msra.mxu0 %v315
    %854 = vmatprep.subr.mxu0 %v320
    %855 = vmatpush1.msra.mxu0 %v319
    %856 = vmatprep.subr.mxu0 %v324
    %857 = vmatpush1.msra.mxu0 %v323
    %858 = vmatprep.subr.mxu0 %v328
    %859 = vmatpush1.msra.mxu0 %v327
    %860 = vmatprep.subr.mxu0 %v332
    %861 = vmatpush1.msra.mxu0 %v331
    %862 = vmatprep.subr.mxu0 %v336
    %863 = vmatpush1.msra.mxu0 %v335
    %864 = vmatprep.subr.mxu0 %v340
    %865 = vmatpush1.msra.mxu0 %v339
    %866 = vmatprep.subr.mxu0 %v344
    %867 = vmatpush1.msra.mxu0 %v343
    %868 = vmatprep.subr.mxu0 %v348
    %869 = vmatpush1.msra.mxu0 %v347
    %870 = vmatprep.subr.mxu0 %v352
    %871 = vmatpush1.msra.mxu0 %v351
    %872 = vmatprep.subr.mxu0 %v356
    %873 = vmatpush1.msra.mxu0 %v355
    %874 = vmatprep.subr.mxu0 %v360
    %875 = vmatpush1.msra.mxu0 %v359
    %876 = vmatprep.subr.mxu0 %v364
    %877 = vmatpush1.msra.mxu0 %v363
    %878 = vmatprep.subr.mxu0 %v368
    %879 = vmatpush1.msra.mxu0 %v367
    %880 = vmatprep.subr.mxu0 %v372
    %881 = vmatpush1.msra.mxu0 %v371
    %882 = vmatprep.subr.mxu0 %v376
    %883 = vmatpush1.msra.mxu0 %v375
    %884 = vmatprep.subr.mxu0 %v380
    %885 = vmatpush1.msra.mxu0 %v379
    %886 = vmatprep.subr.mxu0 %v384
    %887 = vmatpush1.msra.mxu0 %v383
    %888 = vmatprep.subr.mxu0 %v388
    %889 = vmatpush1.msra.mxu0 %v387
    %890 = vmatprep.subr.mxu0 %v392
    %891 = vmatpush1.msra.mxu0 %v391
    %892 = vmatprep.subr.mxu0 %v396
    %893 = vmatpush1.msra.mxu0 %v395
    %894 = vmatprep.subr.mxu0 %v400
    %895 = vmatpush1.msra.mxu0 %v399
    %896 = vmatprep.mubr.f32.mxu0 %v825
    %897 = vmatmul.mubr.f32.gmra.mrb[0].mxu0 %v817
    %v898 = vpop.f32.mrb[0].mxu0
    %v899 = vadd.f32 0.0, %v898
    %v900 = vpop.f32.mrb[0].mxu0
    %v901 = vadd.f32 0.0, %v900
    %902 = vdwg.mxu0
    %903 = vmatprep.subr.mxu0 %v404
    %904 = vmatpush1.msra.mxu0 %v403
    %905 = vmatprep.subr.mxu0 %v408
    %906 = vmatpush1.msra.mxu0 %v407
    %907 = vmatprep.subr.mxu0 %v412
    %908 = vmatpush1.msra.mxu0 %v411
    %909 = vmatprep.subr.mxu0 %v416
    %910 = vmatpush1.msra.mxu0 %v415
    %911 = vmatprep.subr.mxu0 %v420
    %912 = vmatpush1.msra.mxu0 %v419
    %913 = vmatprep.subr.mxu0 %v424
    %914 = vmatpush1.msra.mxu0 %v423
    %915 = vmatprep.subr.mxu0 %v428
    %916 = vmatpush1.msra.mxu0 %v427
    %917 = vmatprep.subr.mxu0 %v432
    %918 = vmatpush1.msra.mxu0 %v431
    %919 = vmatprep.subr.mxu0 %v436
    %920 = vmatpush1.msra.mxu0 %v435
    %921 = vmatprep.subr.mxu0 %v440
    %922 = vmatpush1.msra.mxu0 %v439
    %923 = vmatprep.subr.mxu0 %v444
    %924 = vmatpush1.msra.mxu0 %v443
    %925 = vmatprep.subr.mxu0 %v448
    %926 = vmatpush1.msra.mxu0 %v447
    %927 = vmatprep.subr.mxu0 %v452
    %928 = vmatpush1.msra.mxu0 %v451
    %929 = vmatprep.subr.mxu0 %v456
    %930 = vmatpush1.msra.mxu0 %v455
    %931 = vmatprep.subr.mxu0 %v460
    %932 = vmatpush1.msra.mxu0 %v459
    %933 = vmatprep.subr.mxu0 %v464
    %934 = vmatpush1.msra.mxu0 %v463
    %935 = vmatprep.subr.mxu0 %v468
    %936 = vmatpush1.msra.mxu0 %v467
    %937 = vmatprep.subr.mxu0 %v472
    %938 = vmatpush1.msra.mxu0 %v471
    %939 = vmatprep.subr.mxu0 0.0
    %940 = vmatpush1.msra.mxu0 0.0
    %941 = vmatprep.subr.mxu0 0.0
    %942 = vmatpush1.msra.mxu0 0.0
    %943 = vmatprep.subr.mxu0 0.0
    %944 = vmatpush1.msra.mxu0 0.0
    %945 = vmatprep.subr.mxu0 0.0
    %946 = vmatpush1.msra.mxu0 0.0
    %947 = vmatprep.subr.mxu0 0.0
    %948 = vmatpush1.msra.mxu0 0.0
    %949 = vmatprep.subr.mxu0 0.0
    %950 = vmatpush1.msra.mxu0 0.0
    %951 = vmatprep.subr.mxu0 0.0
    %952 = vmatpush1.msra.mxu0 0.0
    %953 = vmatprep.subr.mxu0 0.0
    %954 = vmatpush1.msra.mxu0 0.0
    %955 = vmatprep.subr.mxu0 0.0
    %956 = vmatpush1.msra.mxu0 0.0
    %957 = vmatprep.subr.mxu0 0.0
    %958 = vmatpush1.msra.mxu0 0.0
    %959 = vmatprep.subr.mxu0 0.0
    %960 = vmatpush1.msra.mxu0 0.0
    %961 = vmatprep.subr.mxu0 0.0
    %962 = vmatpush1.msra.mxu0 0.0
    %963 = vmatprep.subr.mxu0 0.0
    %964 = vmatpush1.msra.mxu0 0.0
    %965 = vmatprep.subr.mxu0 0.0
    %966 = vmatpush1.msra.mxu0 0.0
    %967 = vmatprep.mubr.f32.mxu0 %v830
    %968 = vmatmul.mubr.f32.gmra.mrb[0].mxu0 %v824
    %v969 = vpop.f32.mrb[0].mxu0
    %v970 = vadd.f32 %v899, %v969
    %v971 = vpop.f32.mrb[0].mxu0
    %v972 = vadd.f32 %v901, %v971
    %973 = vdwg.mxu0
    %974 = vmatprep.subr.mxu0 %v278
    %975 = vmatpush1.msra.mxu0 %v277
    %976 = vmatprep.subr.mxu0 %v282
    %977 = vmatpush1.msra.mxu0 %v281
    %978 = vmatprep.subr.mxu0 %v286
    %979 = vmatpush1.msra.mxu0 %v285
    %980 = vmatprep.subr.mxu0 %v290
    %981 = vmatpush1.msra.mxu0 %v289
    %982 = vmatprep.subr.mxu0 %v294
    %983 = vmatpush1.msra.mxu0 %v293
    %984 = vmatprep.subr.mxu0 %v298
    %985 = vmatpush1.msra.mxu0 %v297
    %986 = vmatprep.subr.mxu0 %v302
    %987 = vmatpush1.msra.mxu0 %v301
    %988 = vmatprep.subr.mxu0 %v306
    %989 = vmatpush1.msra.mxu0 %v305
    %990 = vmatprep.subr.mxu0 %v310
    %991 = vmatpush1.msra.mxu0 %v309
    %992 = vmatprep.subr.mxu0 %v314
    %993 = vmatpush1.msra.mxu0 %v313
    %994 = vmatprep.subr.mxu0 %v318
    %995 = vmatpush1.msra.mxu0 %v317
    %996 = vmatprep.subr.mxu0 %v322
    %997 = vmatpush1.msra.mxu0 %v321
    %998 = vmatprep.subr.mxu0 %v326
    %999 = vmatpush1.msra.mxu0 %v325
    %1000 = vmatprep.subr.mxu0 %v330
    %1001 = vmatpush1.msra.mxu0 %v329
    %1002 = vmatprep.subr.mxu0 %v334
    %1003 = vmatpush1.msra.mxu0 %v333
    %1004 = vmatprep.subr.mxu0 %v338
    %1005 = vmatpush1.msra.mxu0 %v337
    %1006 = vmatprep.subr.mxu0 %v342
    %1007 = vmatpush1.msra.mxu0 %v341
    %1008 = vmatprep.subr.mxu0 %v346
    %1009 = vmatpush1.msra.mxu0 %v345
    %1010 = vmatprep.subr.mxu0 %v350
    %1011 = vmatpush1.msra.mxu0 %v349
    %1012 = vmatprep.subr.mxu0 %v354
    %1013 = vmatpush1.msra.mxu0 %v353
    %1014 = vmatprep.subr.mxu0 %v358
    %1015 = vmatpush1.msra.mxu0 %v357
    %1016 = vmatprep.subr.mxu0 %v362
    %1017 = vmatpush1.msra.mxu0 %v361
    %1018 = vmatprep.subr.mxu0 %v366
    %1019 = vmatpush1.msra.mxu0 %v365
    %1020 = vmatprep.subr.mxu0 %v370
    %1021 = vmatpush1.msra.mxu0 %v369
    %1022 = vmatprep.subr.mxu0 %v374
    %1023 = vmatpush1.msra.mxu0 %v373
    %1024 = vmatprep.subr.mxu0 %v378
    %1025 = vmatpush1.msra.mxu0 %v377
    %1026 = vmatprep.subr.mxu0 %v382
    %1027 = vmatpush1.msra.mxu0 %v381
    %1028 = vmatprep.subr.mxu0 %v386
    %1029 = vmatpush1.msra.mxu0 %v385
    %1030 = vmatprep.subr.mxu0 %v390
    %1031 = vmatpush1.msra.mxu0 %v389
    %1032 = vmatprep.subr.mxu0 %v394
    %1033 = vmatpush1.msra.mxu0 %v393
    %1034 = vmatprep.subr.mxu0 %v398
    %1035 = vmatpush1.msra.mxu0 %v397
    %1036 = vmatprep.subr.mxu0 %v402
    %1037 = vmatpush1.msra.mxu0 %v401
    %1038 = vmatprep.mubr.f32.mxu0 %v825
    %1039 = vmatmul.mubr.f32.gmra.mrb[0].mxu0 %v817
    %v1040 = vpop.f32.mrb[0].mxu0
    %v1041 = vadd.f32 0.0, %v1040
    %v1042 = vpop.f32.mrb[0].mxu0
    %v1043 = vadd.f32 0.0, %v1042
    %1044 = vdwg.mxu0
    %1045 = vmatprep.subr.mxu0 %v406
    %1046 = vmatpush1.msra.mxu0 %v405
    %1047 = vmatprep.subr.mxu0 %v410
    %1048 = vmatpush1.msra.mxu0 %v409
    %1049 = vmatprep.subr.mxu0 %v414
    %1050 = vmatpush1.msra.mxu0 %v413
    %1051 = vmatprep.subr.mxu0 %v418
    %1052 = vmatpush1.msra.mxu0 %v417
    %1053 = vmatprep.subr.mxu0 %v422
    %1054 = vmatpush1.msra.mxu0 %v421
    %1055 = vmatprep.subr.mxu0 %v426
    %1056 = vmatpush1.msra.mxu0 %v425
    %1057 = vmatprep.subr.mxu0 %v430
    %1058 = vmatpush1.msra.mxu0 %v429
    %1059 = vmatprep.subr.mxu0 %v434
    %1060 = vmatpush1.msra.mxu0 %v433
    %1061 = vmatprep.subr.mxu0 %v438
    %1062 = vmatpush1.msra.mxu0 %v437
    %1063 = vmatprep.subr.mxu0 %v442
    %1064 = vmatpush1.msra.mxu0 %v441
    %1065 = vmatprep.subr.mxu0 %v446
    %1066 = vmatpush1.msra.mxu0 %v445
    %1067 = vmatprep.subr.mxu0 %v450
    %1068 = vmatpush1.msra.mxu0 %v449
    %1069 = vmatprep.subr.mxu0 %v454
    %1070 = vmatpush1.msra.mxu0 %v453
    %1071 = vmatprep.subr.mxu0 %v458
    %1072 = vmatpush1.msra.mxu0 %v457
    %1073 = vmatprep.subr.mxu0 %v462
    %1074 = vmatpush1.msra.mxu0 %v461
    %1075 = vmatprep.subr.mxu0 %v466
    %1076 = vmatpush1.msra.mxu0 %v465
    %1077 = vmatprep.subr.mxu0 %v470
    %1078 = vmatpush1.msra.mxu0 %v469
    %1079 = vmatprep.subr.mxu0 %v474
    %1080 = vmatpush1.msra.mxu0 %v473
    %1081 = vmatprep.subr.mxu0 0.0
    %1082 = vmatpush1.msra.mxu0 0.0
    %1083 = vmatprep.subr.mxu0 0.0
    %1084 = vmatpush1.msra.mxu0 0.0
    %1085 = vmatprep.subr.mxu0 0.0
    %1086 = vmatpush1.msra.mxu0 0.0
    %1087 = vmatprep.subr.mxu0 0.0
    %1088 = vmatpush1.msra.mxu0 0.0
    %1089 = vmatprep.subr.mxu0 0.0
    %1090 = vmatpush1.msra.mxu0 0.0
    %1091 = vmatprep.subr.mxu0 0.0
    %1092 = vmatpush1.msra.mxu0 0.0
    %1093 = vmatprep.subr.mxu0 0.0
    %1094 = vmatpush1.msra.mxu0 0.0
    %1095 = vmatprep.subr.mxu0 0.0
    %1096 = vmatpush1.msra.mxu0 0.0
    %1097 = vmatprep.subr.mxu0 0.0
    %1098 = vmatpush1.msra.mxu0 0.0
    %1099 = vmatprep.subr.mxu0 0.0
    %1100 = vmatpush1.msra.mxu0 0.0
    %1101 = vmatprep.subr.mxu0 0.0
    %1102 = vmatpush1.msra.mxu0 0.0
    %1103 = vmatprep.subr.mxu0 0.0
    %1104 = vmatpush1.msra.mxu0 0.0
    %1105 = vmatprep.subr.mxu0 0.0
    %1106 = vmatpush1.msra.mxu0 0.0
    %1107 = vmatprep.subr.mxu0 0.0
    %1108 = vmatpush1.msra.mxu0 0.0
    %1109 = vmatprep.mubr.f32.mxu0 %v830
    %1110 = vmatmul.mubr.f32.gmra.mrb[0].mxu0 %v824
    %v1111 = vpop.f32.mrb[0].mxu0
    %v1112 = vadd.f32 %v1041, %v1111
    %v1113 = vpop.f32.mrb[0].mxu0
    %v1114 = vadd.f32 %v1043, %v1113
    %1115 = vdwg.mxu0
    %v1116 = vsub.f32 %v663, %v970
    %v1117 = vsub.f32 %v665, %v972
    %v1118 = vsub.f32 %v805, %v1112
    %v1119 = vsub.f32 %v807, %v1114
    %v1120 = vadd.f32 %v663, %v970
    %v1121 = vadd.f32 %v665, %v972
    %v1122 = vadd.f32 %v805, %v1112
    %v1123 = vadd.f32 %v807, %v1114
    %vm1124 = vcmp.lt.f32.partialorder %v1116, 0.0
    %vm1125 = vcmp.lt.f32.partialorder %v1117, 0.0
    %vm1126 = vcmp.lt.f32.partialorder %v1118, 0.0
    %vm1127 = vcmp.lt.f32.partialorder %v1119, 0.0
    %vm1128 = vcmp.gt.f32.partialorder %v1120, 0.0
    %vm1129 = vcmp.gt.f32.partialorder %v1121, 0.0
    %vm1130 = vcmp.gt.f32.partialorder %v1122, 0.0
    %vm1131 = vcmp.gt.f32.partialorder %v1123, 0.0
    %vm1132 = vmand %vm1124, %vm1128
    %vm1133 = vmand %vm1125, %vm1129
    %vm1134 = vmand %vm1126, %vm1130
    %vm1135 = vmand %vm1127, %vm1131
    %v1136 = vsel %vm1132, 1, 0
    %v1137 = vsel %vm1133, 1, 0
    %v1138 = vsel %vm1134, 1, 0
    %v1139 = vsel %vm1135, 1, 0
    %v1140 = vcvt.s32.f32 %v1136
    %v1141 = vcvt.s32.f32 %v1137
    %v1142 = vcvt.s32.f32 %v1138
    %v1143 = vcvt.s32.f32 %v1139
    %v1144 = vsub.f32 %v1120, %v1116
    %v1145 = vsub.f32 %v1121, %v1117
    %v1146 = vsub.f32 %v1122, %v1118
    %v1147 = vsub.f32 %v1123, %v1119
    %v1148 = vadd.f32 %v1144, 1e-06
    %v1149 = vadd.f32 %v1145, 1e-06
    %v1150 = vadd.f32 %v1146, 1e-06
    %v1151 = vadd.f32 %v1147, 1e-06
    %v1152 = vrcp.pop %v1148
    %v1153 = vmul.f32 %v1120, %v1152
    %v1154 = vrcp.pop %v1149
    %v1155 = vmul.f32 %v1121, %v1154
    %v1156 = vrcp.pop %v1150
    %v1157 = vmul.f32 %v1122, %v1156
    %v1158 = vrcp.pop %v1151
    %v1159 = vmul.f32 %v1123, %v1158
    %v1160 = vmul.f32 %v1140, %v1153
    %v1161 = vmul.f32 %v1141, %v1155
    %v1162 = vmul.f32 %v1142, %v1157
    %v1163 = vmul.f32 %v1143, %v1159
    %v1164 = vsub.f32 1.0, %v1140
    %v1165 = vsub.f32 1.0, %v1141
    %v1166 = vsub.f32 1.0, %v1142
    %v1167 = vsub.f32 1.0, %v1143
    %v1168 = vadd.f32 %v1160, %v1164
    %v1169 = vadd.f32 %v1161, %v1165
    %v1170 = vadd.f32 %v1162, %v1166
    %v1171 = vadd.f32 %v1163, %v1167
    %v1172 = vsel %vm1128, 1, 0
    %v1173 = vsel %vm1129, 1, 0
    %v1174 = vsel %vm1130, 1, 0
    %v1175 = vsel %vm1131, 1, 0
    %v1176 = vcvt.s32.f32 %v1172
    %v1177 = vcvt.s32.f32 %v1173
    %v1178 = vcvt.s32.f32 %v1174
    %v1179 = vcvt.s32.f32 %v1175
    %v1180 = vmul.f32 %v1168, %v1176
    %v1181 = vmul.f32 %v1169, %v1177
    %v1182 = vmul.f32 %v1170, %v1178
    %v1183 = vmul.f32 %v1171, %v1179
    %v1184 = vmax.f32 %v1116, 0.0
    %v1185 = vmax.f32 %v1117, 0.0
    %v1186 = vmax.f32 %v1118, 0.0
    %v1187 = vmax.f32 %v1119, 0.0
    %v1188 = vmax.f32 %v1120, 0.0
    %v1189 = vmax.f32 %v1121, 0.0
    %v1190 = vmax.f32 %v1122, 0.0
    %v1191 = vmax.f32 %v1123, 0.0
    %v1196 = vcombine.low %v1180, %v1181
    %v1197 = vcombine.low %v1182, %v1183
    %v1199 = vunpack.c.l.s4 1983009808
    %v1200 = vunpack.c.0.s8 %v1199
    %v1201 = vlaneseq
    %v1202 = vshrl.u32 %v1201, 7
    %v1203 = vsub.s32 %v1200, %v1202
    %v1204 = vrot.slane %v1196, %v1203
    %v1206 = vunpack.c.l.s4 1983009808
    %v1207 = vunpack.c.0.s8 %v1206
    %v1208 = vlaneseq
    %v1209 = vshrl.u32 %v1208, 7
    %v1210 = vsub.s32 %v1207, %v1209
    %v1211 = vrot.slane %v1197, %v1210
    %v1212 = vcombine.low %v1204, %v1211
    %1214 = vst [vmem:[#allocation10] sm:$0xff] %v1212
    %v1215 = vld [vmem:[%s5] sm:$0xff]
    %v1216 = vld [vmem:[%s5 + $0x8] sm:$0xff]
    %v1217 = vld [vmem:[%s5 + $0x10] sm:$0xff]
    %v1218 = vld [vmem:[%s5 + $0x18] sm:$0xff]
    %v1219 = vld [vmem:[%s5 + $0x20] sm:$0xff]
    %v1220 = vld [vmem:[%s5 + $0x28] sm:$0xff]
    %v1221 = vld [vmem:[%s5 + $0x30] sm:$0xff]
    %v1222 = vld [vmem:[%s5 + $0x38] sm:$0xff]
    %v1223 = vld [vmem:[%s5 + $0x40] sm:$0xff]
    %v1224 = vld [vmem:[%s5 + $0x48] sm:$0xff]
    %v1225 = vld [vmem:[%s5 + $0x50] sm:$0xff]
    %v1226 = vld [vmem:[%s5 + $0x58] sm:$0xff]
    %v1227 = vld [vmem:[%s5 + $0x60] sm:$0xff]
    %v1228 = vld [vmem:[%s5 + $0x68] sm:$0xff]
    %v1229 = vld [vmem:[%s5 + $0x70] sm:$0xff]
    %v1230 = vld [vmem:[%s5 + $0x78] sm:$0xff]
    %v1231 = vld [vmem:[%s5 + $0x80] sm:$0xff]
    %v1232 = vld [vmem:[%s5 + $0x88] sm:$0xff]
    %v1233 = vld [vmem:[%s5 + $0x90] sm:$0xff]
    %v1234 = vld [vmem:[%s5 + $0x98] sm:$0xff]
    %v1235 = vld [vmem:[%s5 + $0xa0] sm:$0xff]
    %v1236 = vld [vmem:[%s5 + $0xa8] sm:$0xff]
    %v1237 = vld [vmem:[%s5 + $0xb0] sm:$0xff]
    %v1238 = vld [vmem:[%s5 + $0xb8] sm:$0xff]
    %v1239 = vld [vmem:[%s5 + $0xc0] sm:$0xff]
    %v1240 = vld [vmem:[%s5 + $0xc8] sm:$0xff]
    %v1241 = vld [vmem:[%s5 + $0xd0] sm:$0xff]
    %v1242 = vld [vmem:[%s5 + $0xd8] sm:$0xff]
    %v1243 = vld [vmem:[%s5 + $0xe0] sm:$0xff]
    %v1244 = vld [vmem:[%s5 + $0xe8] sm:$0xff]
    %v1245 = vld [vmem:[%s5 + $0xf0] sm:$0xff]
    %v1246 = vld [vmem:[%s5 + $0xf8] sm:$0xff]
    %v1247 = vld [vmem:[%s5 + $0x100] sm:$0xff]
    %v1248 = vld [vmem:[%s5 + $0x108] sm:$0xff]
    %v1249 = vld [vmem:[%s5 + $0x110] sm:$0xff]
    %v1250 = vld [vmem:[%s5 + $0x118] sm:$0xff]
    %v1251 = vld [vmem:[%s5 + $0x120] sm:$0xff]
    %v1252 = vld [vmem:[%s5 + $0x128] sm:$0xff]
    %v1253 = vld [vmem:[%s5 + $0x130] sm:$0xff]
    %v1254 = vld [vmem:[%s5 + $0x138] sm:$0xff]
    %v1255 = vld [vmem:[%s5 + $0x140] sm:$0xff]
    %v1256 = vld [vmem:[%s5 + $0x148] sm:$0xff]
    %v1257 = vld [vmem:[%s5 + $0x150] sm:$0xff]
    %v1258 = vld [vmem:[%s5 + $0x158] sm:$0xff]
    %v1259 = vld [vmem:[%s5 + $0x160] sm:$0xff]
    %v1260 = vld [vmem:[%s5 + $0x168] sm:$0xff]
    %v1261 = vld [vmem:[%s5 + $0x170] sm:$0xff]
    %v1262 = vld [vmem:[%s5 + $0x178] sm:$0xff]
    %v1263 = vld [vmem:[%s5 + $0x180] sm:$0xff]
    %v1264 = vld [vmem:[%s5 + $0x188] sm:$0xff]
    %v1265 = vld [vmem:[%s5 + $0x190] sm:$0xff]
    %v1266 = vld [vmem:[%s5 + $0x198] sm:$0xff]
    %v1267 = vld [vmem:[%s5 + $0x1a0] sm:$0xff]
    %v1268 = vld [vmem:[%s5 + $0x1a8] sm:$0xff]
    %v1269 = vld [vmem:[%s5 + $0x1b0] sm:$0xff]
    %v1270 = vld [vmem:[%s5 + $0x1b8] sm:$0xff]
    %v1271 = vld [vmem:[%s5 + $0x1c0] sm:$0xff]
    %v1272 = vld [vmem:[%s5 + $0x1c8] sm:$0xff]
    %v1273 = vld [vmem:[%s5 + $0x1d0] sm:$0xff]
    %v1274 = vld [vmem:[%s5 + $0x1d8] sm:$0xff]
    %v1275 = vld [vmem:[%s5 + $0x1e0] sm:$0xff]
    %v1276 = vld [vmem:[%s5 + $0x1e8] sm:$0xff]
    %v1277 = vld [vmem:[%s5 + $0x1f0] sm:$0xff]
    %v1278 = vld [vmem:[%s5 + $0x1f8] sm:$0xff]
    %v1279 = vld [vmem:[%s6] sm:$0xff]
    %v1280 = vld [vmem:[%s6 + $0x8] sm:$0xff]
    %v1281 = vld [vmem:[%s6 + $0x10] sm:$0xff]
    %v1282 = vld [vmem:[%s6 + $0x18] sm:$0xff]
    %v1283 = vld [vmem:[%s6 + $0x20] sm:$0xff]
    %v1284 = vld [vmem:[%s6 + $0x28] sm:$0xff]
    %v1285 = vld [vmem:[%s6 + $0x30] sm:$0xff]
    %v1286 = vld [vmem:[%s6 + $0x38] sm:$0xff]
    %v1287 = vld [vmem:[%s6 + $0x40] sm:$0xff]
    %v1288 = vld [vmem:[%s6 + $0x48] sm:$0xff]
    %v1289 = vld [vmem:[%s6 + $0x50] sm:$0xff]
    %v1290 = vld [vmem:[%s6 + $0x58] sm:$0xff]
    %v1291 = vld [vmem:[%s6 + $0x60] sm:$0xff]
    %v1292 = vld [vmem:[%s6 + $0x68] sm:$0xff]
    %v1293 = vld [vmem:[%s6 + $0x70] sm:$0xff]
    %v1294 = vld [vmem:[%s6 + $0x78] sm:$0xff]
    %v1295 = vld [vmem:[%s6 + $0x80] sm:$0xff]
    %v1296 = vld [vmem:[%s6 + $0x88] sm:$0xff]
    %v1297 = vld [vmem:[%s6 + $0x90] sm:$0xff]
    %v1298 = vld [vmem:[%s6 + $0x98] sm:$0xff]
    %v1299 = vld [vmem:[%s6 + $0xa0] sm:$0xff]
    %v1300 = vld [vmem:[%s6 + $0xa8] sm:$0xff]
    %v1301 = vld [vmem:[%s6 + $0xb0] sm:$0xff]
    %v1302 = vld [vmem:[%s6 + $0xb8] sm:$0xff]
    %v1303 = vld [vmem:[%s6 + $0xc0] sm:$0xff]
    %v1304 = vld [vmem:[%s6 + $0xc8] sm:$0xff]
    %v1305 = vld [vmem:[%s6 + $0xd0] sm:$0xff]
    %v1306 = vld [vmem:[%s6 + $0xd8] sm:$0xff]
    %v1307 = vld [vmem:[%s6 + $0xe0] sm:$0xff]
    %v1308 = vld [vmem:[%s6 + $0xe8] sm:$0xff]
    %v1309 = vld [vmem:[%s6 + $0xf0] sm:$0xff]
    %v1310 = vld [vmem:[%s6 + $0xf8] sm:$0xff]
    %v1311 = vld [vmem:[%s6 + $0x100] sm:$0xff]
    %v1312 = vld [vmem:[%s6 + $0x108] sm:$0xff]
    %v1313 = vld [vmem:[%s6 + $0x110] sm:$0xff]
    %v1314 = vld [vmem:[%s6 + $0x118] sm:$0xff]
    %v1315 = vld [vmem:[%s6 + $0x120] sm:$0xff]
    %v1316 = vld [vmem:[%s6 + $0x128] sm:$0xff]
    %v1317 = vld [vmem:[%s6 + $0x130] sm:$0xff]
    %v1318 = vld [vmem:[%s6 + $0x138] sm:$0xff]
    %v1319 = vld [vmem:[%s6 + $0x140] sm:$0xff]
    %v1320 = vld [vmem:[%s6 + $0x148] sm:$0xff]
    %v1321 = vld [vmem:[%s6 + $0x150] sm:$0xff]
    %v1322 = vld [vmem:[%s6 + $0x158] sm:$0xff]
    %v1323 = vld [vmem:[%s6 + $0x160] sm:$0xff]
    %v1324 = vld [vmem:[%s6 + $0x168] sm:$0xff]
    %v1325 = vld [vmem:[%s6 + $0x170] sm:$0xff]
    %v1326 = vld [vmem:[%s6 + $0x178] sm:$0xff]
    %v1327 = vld [vmem:[%s6 + $0x180] sm:$0xff]
    %v1328 = vld [vmem:[%s6 + $0x188] sm:$0xff]
    %v1329 = vld [vmem:[%s6 + $0x190] sm:$0xff]
    %v1330 = vld [vmem:[%s6 + $0x198] sm:$0xff]
    %v1331 = vld [vmem:[%s6 + $0x1a0] sm:$0xff]
    %v1332 = vld [vmem:[%s6 + $0x1a8] sm:$0xff]
    %v1333 = vld [vmem:[%s6 + $0x1b0] sm:$0xff]
    %v1334 = vld [vmem:[%s6 + $0x1b8] sm:$0xff]
    %v1335 = vld [vmem:[%s6 + $0x1c0] sm:$0xff]
    %v1336 = vld [vmem:[%s6 + $0x1c8] sm:$0xff]
    %v1337 = vld [vmem:[%s6 + $0x1d0] sm:$0xff]
    %v1338 = vld [vmem:[%s6 + $0x1d8] sm:$0xff]
    %v1339 = vld [vmem:[%s6 + $0x1e0] sm:$0xff]
    %v1340 = vld [vmem:[%s6 + $0x1e8] sm:$0xff]
    %v1341 = vld [vmem:[%s6 + $0x1f0] sm:$0xff]
    %v1342 = vld [vmem:[%s6 + $0x1f8] sm:$0xff]
    %v1343 = vld [vmem:[%s7] sm:$0x1]
    %v1344 = vadd.f32 %v1184, %v1188
    %v1345 = vadd.f32 %v1185, %v1189
    %v1346 = vadd.f32 %v1186, %v1190
    %v1347 = vadd.f32 %v1187, %v1191
    %v1348 = vmul.f32 %v1344, 0.5
    %v1349 = vmul.f32 %v1345, 0.5
    %v1350 = vmul.f32 %v1346, 0.5
    %v1351 = vmul.f32 %v1347, 0.5
    %v1352 = vsub.f32 %v1188, %v1184
    %v1353 = vsub.f32 %v1189, %v1185
    %v1354 = vsub.f32 %v1190, %v1186
    %v1355 = vsub.f32 %v1191, %v1187
    %v1356 = vmul.f32 %v1352, 0.5
    %v1357 = vmul.f32 %v1353, 0.5
    %v1358 = vmul.f32 %v1354, 0.5
    %v1359 = vmul.f32 %v1355, 0.5
    %v1361 = vlaneseq
    %v1362 = vshrl.u32 %v1361, 7
    %v1363 = vsub.s32 0, %v1362
    %v1364 = vrot.slane %v1343, %v1363
    %1366 = vmatprep.subr.mxu0 0.0
    %1367 = vmatpush1.msra.mxu0 %v1215
    %1368 = vmatprep.subr.mxu0 0.0
    %1369 = vmatpush1.msra.mxu0 %v1216
    %1370 = vmatprep.subr.mxu0 0.0
    %1371 = vmatpush1.msra.mxu0 %v1217
    %1372 = vmatprep.subr.mxu0 0.0
    %1373 = vmatpush1.msra.mxu0 %v1218
    %1374 = vmatprep.subr.mxu0 0.0
    %1375 = vmatpush1.msra.mxu0 %v1219
    %1376 = vmatprep.subr.mxu0 0.0
    %1377 = vmatpush1.msra.mxu0 %v1220
    %1378 = vmatprep.subr.mxu0 0.0
    %1379 = vmatpush1.msra.mxu0 %v1221
    %1380 = vmatprep.subr.mxu0 0.0
    %1381 = vmatpush1.msra.mxu0 %v1222
    %1382 = vmatprep.subr.mxu0 0.0
    %1383 = vmatpush1.msra.mxu0 %v1223
    %1384 = vmatprep.subr.mxu0 0.0
    %1385 = vmatpush1.msra.mxu0 %v1224
    %1386 = vmatprep.subr.mxu0 0.0
    %1387 = vmatpush1.msra.mxu0 %v1225
    %1388 = vmatprep.subr.mxu0 0.0
    %1389 = vmatpush1.msra.mxu0 %v1226
    %1390 = vmatprep.subr.mxu0 0.0
    %1391 = vmatpush1.msra.mxu0 %v1227
    %1392 = vmatprep.subr.mxu0 0.0
    %1393 = vmatpush1.msra.mxu0 %v1228
    %1394 = vmatprep.subr.mxu0 0.0
    %1395 = vmatpush1.msra.mxu0 %v1229
    %1396 = vmatprep.subr.mxu0 0.0
    %1397 = vmatpush1.msra.mxu0 %v1230
    %1398 = vmatprep.subr.mxu0 0.0
    %1399 = vmatpush1.msra.mxu0 %v1231
    %1400 = vmatprep.subr.mxu0 0.0
    %1401 = vmatpush1.msra.mxu0 %v1232
    %1402 = vmatprep.subr.mxu0 0.0
    %1403 = vmatpush1.msra.mxu0 %v1233
    %1404 = vmatprep.subr.mxu0 0.0
    %1405 = vmatpush1.msra.mxu0 %v1234
    %1406 = vmatprep.subr.mxu0 0.0
    %1407 = vmatpush1.msra.mxu0 %v1235
    %1408 = vmatprep.subr.mxu0 0.0
    %1409 = vmatpush1.msra.mxu0 %v1236
    %1410 = vmatprep.subr.mxu0 0.0
    %1411 = vmatpush1.msra.mxu0 %v1237
    %1412 = vmatprep.subr.mxu0 0.0
    %1413 = vmatpush1.msra.mxu0 %v1238
    %1414 = vmatprep.subr.mxu0 0.0
    %1415 = vmatpush1.msra.mxu0 %v1239
    %1416 = vmatprep.subr.mxu0 0.0
    %1417 = vmatpush1.msra.mxu0 %v1240
    %1418 = vmatprep.subr.mxu0 0.0
    %1419 = vmatpush1.msra.mxu0 %v1241
    %1420 = vmatprep.subr.mxu0 0.0
    %1421 = vmatpush1.msra.mxu0 %v1242
    %1422 = vmatprep.subr.mxu0 0.0
    %1423 = vmatpush1.msra.mxu0 %v1243
    %1424 = vmatprep.subr.mxu0 0.0
    %1425 = vmatpush1.msra.mxu0 %v1244
    %1426 = vmatprep.subr.mxu0 0.0
    %1427 = vmatpush1.msra.mxu0 %v1245
    %1428 = vmatprep.subr.mxu0 0.0
    %1429 = vmatpush1.msra.mxu0 %v1246
    %1430 = vmatprep.mubr.f32.mxu0 %v1349
    %1431 = vmatmul.mubr.f32.gmra.mrb[0].mxu0 %v1348
    %v1432 = vpop.f32.mrb[0].mxu0
    %v1433 = vadd.f32 %v1364, %v1432
    %v1434 = vpop.f32.mrb[0].mxu0
    %1435 = vdwg.mxu0
    %1436 = vmatprep.subr.mxu0 0.0
    %1437 = vmatpush1.msra.mxu0 %v1247
    %1438 = vmatprep.subr.mxu0 0.0
    %1439 = vmatpush1.msra.mxu0 %v1248
    %1440 = vmatprep.subr.mxu0 0.0
    %1441 = vmatpush1.msra.mxu0 %v1249
    %1442 = vmatprep.subr.mxu0 0.0
    %1443 = vmatpush1.msra.mxu0 %v1250
    %1444 = vmatprep.subr.mxu0 0.0
    %1445 = vmatpush1.msra.mxu0 %v1251
    %1446 = vmatprep.subr.mxu0 0.0
    %1447 = vmatpush1.msra.mxu0 %v1252
    %1448 = vmatprep.subr.mxu0 0.0
    %1449 = vmatpush1.msra.mxu0 %v1253
    %1450 = vmatprep.subr.mxu0 0.0
    %1451 = vmatpush1.msra.mxu0 %v1254
    %1452 = vmatprep.subr.mxu0 0.0
    %1453 = vmatpush1.msra.mxu0 %v1255
    %1454 = vmatprep.subr.mxu0 0.0
    %1455 = vmatpush1.msra.mxu0 %v1256
    %1456 = vmatprep.subr.mxu0 0.0
    %1457 = vmatpush1.msra.mxu0 %v1257
    %1458 = vmatprep.subr.mxu0 0.0
    %1459 = vmatpush1.msra.mxu0 %v1258
    %1460 = vmatprep.subr.mxu0 0.0
    %1461 = vmatpush1.msra.mxu0 %v1259
    %1462 = vmatprep.subr.mxu0 0.0
    %1463 = vmatpush1.msra.mxu0 %v1260
    %1464 = vmatprep.subr.mxu0 0.0
    %1465 = vmatpush1.msra.mxu0 %v1261
    %1466 = vmatprep.subr.mxu0 0.0
    %1467 = vmatpush1.msra.mxu0 %v1262
    %1468 = vmatprep.subr.mxu0 0.0
    %1469 = vmatpush1.msra.mxu0 %v1263
    %1470 = vmatprep.subr.mxu0 0.0
    %1471 = vmatpush1.msra.mxu0 %v1264
    %1472 = vmatprep.subr.mxu0 0.0
    %1473 = vmatpush1.msra.mxu0 %v1265
    %1474 = vmatprep.subr.mxu0 0.0
    %1475 = vmatpush1.msra.mxu0 %v1266
    %1476 = vmatprep.subr.mxu0 0.0
    %1477 = vmatpush1.msra.mxu0 %v1267
    %1478 = vmatprep.subr.mxu0 0.0
    %1479 = vmatpush1.msra.mxu0 %v1268
    %1480 = vmatprep.subr.mxu0 0.0
    %1481 = vmatpush1.msra.mxu0 %v1269
    %1482 = vmatprep.subr.mxu0 0.0
    %1483 = vmatpush1.msra.mxu0 %v1270
    %1484 = vmatprep.subr.mxu0 0.0
    %1485 = vmatpush1.msra.mxu0 %v1271
    %1486 = vmatprep.subr.mxu0 0.0
    %1487 = vmatpush1.msra.mxu0 %v1272
    %1488 = vmatprep.subr.mxu0 0.0
    %1489 = vmatpush1.msra.mxu0 %v1273
    %1490 = vmatprep.subr.mxu0 0.0
    %1491 = vmatpush1.msra.mxu0 %v1274
    %1492 = vmatprep.subr.mxu0 0.0
    %1493 = vmatpush1.msra.mxu0 %v1275
    %1494 = vmatprep.subr.mxu0 0.0
    %1495 = vmatpush1.msra.mxu0 %v1276
    %1496 = vmatprep.subr.mxu0 0.0
    %1497 = vmatpush1.msra.mxu0 %v1277
    %1498 = vmatprep.subr.mxu0 0.0
    %1499 = vmatpush1.msra.mxu0 %v1278
    %1500 = vmatprep.mubr.f32.mxu0 %v1351
    %1501 = vmatmul.mubr.f32.gmra.mrb[0].mxu0 %v1350
    %v1502 = vpop.f32.mrb[0].mxu0
    %v1503 = vadd.f32 %v1433, %v1502
    %v1504 = vpop.f32.mrb[0].mxu0
    %1505 = vdwg.mxu0
    %1506 = vmatprep.subr.mxu0 0.0
    %1507 = vmatpush1.msra.mxu0 %v1279
    %1508 = vmatprep.subr.mxu0 0.0
    %1509 = vmatpush1.msra.mxu0 %v1280
    %1510 = vmatprep.subr.mxu0 0.0
    %1511 = vmatpush1.msra.mxu0 %v1281
    %1512 = vmatprep.subr.mxu0 0.0
    %1513 = vmatpush1.msra.mxu0 %v1282
    %1514 = vmatprep.subr.mxu0 0.0
    %1515 = vmatpush1.msra.mxu0 %v1283
    %1516 = vmatprep.subr.mxu0 0.0
    %1517 = vmatpush1.msra.mxu0 %v1284
    %1518 = vmatprep.subr.mxu0 0.0
    %1519 = vmatpush1.msra.mxu0 %v1285
    %1520 = vmatprep.subr.mxu0 0.0
    %1521 = vmatpush1.msra.mxu0 %v1286
    %1522 = vmatprep.subr.mxu0 0.0
    %1523 = vmatpush1.msra.mxu0 %v1287
    %1524 = vmatprep.subr.mxu0 0.0
    %1525 = vmatpush1.msra.mxu0 %v1288
    %1526 = vmatprep.subr.mxu0 0.0
    %1527 = vmatpush1.msra.mxu0 %v1289
    %1528 = vmatprep.subr.mxu0 0.0
    %1529 = vmatpush1.msra.mxu0 %v1290
    %1530 = vmatprep.subr.mxu0 0.0
    %1531 = vmatpush1.msra.mxu0 %v1291
    %1532 = vmatprep.subr.mxu0 0.0
    %1533 = vmatpush1.msra.mxu0 %v1292
    %1534 = vmatprep.subr.mxu0 0.0
    %1535 = vmatpush1.msra.mxu0 %v1293
    %1536 = vmatprep.subr.mxu0 0.0
    %1537 = vmatpush1.msra.mxu0 %v1294
    %1538 = vmatprep.subr.mxu0 0.0
    %1539 = vmatpush1.msra.mxu0 %v1295
    %1540 = vmatprep.subr.mxu0 0.0
    %1541 = vmatpush1.msra.mxu0 %v1296
    %1542 = vmatprep.subr.mxu0 0.0
    %1543 = vmatpush1.msra.mxu0 %v1297
    %1544 = vmatprep.subr.mxu0 0.0
    %1545 = vmatpush1.msra.mxu0 %v1298
    %1546 = vmatprep.subr.mxu0 0.0
    %1547 = vmatpush1.msra.mxu0 %v1299
    %1548 = vmatprep.subr.mxu0 0.0
    %1549 = vmatpush1.msra.mxu0 %v1300
    %1550 = vmatprep.subr.mxu0 0.0
    %1551 = vmatpush1.msra.mxu0 %v1301
    %1552 = vmatprep.subr.mxu0 0.0
    %1553 = vmatpush1.msra.mxu0 %v1302
    %1554 = vmatprep.subr.mxu0 0.0
    %1555 = vmatpush1.msra.mxu0 %v1303
    %1556 = vmatprep.subr.mxu0 0.0
    %1557 = vmatpush1.msra.mxu0 %v1304
    %1558 = vmatprep.subr.mxu0 0.0
    %1559 = vmatpush1.msra.mxu0 %v1305
    %1560 = vmatprep.subr.mxu0 0.0
    %1561 = vmatpush1.msra.mxu0 %v1306
    %1562 = vmatprep.subr.mxu0 0.0
    %1563 = vmatpush1.msra.mxu0 %v1307
    %1564 = vmatprep.subr.mxu0 0.0
    %1565 = vmatpush1.msra.mxu0 %v1308
    %1566 = vmatprep.subr.mxu0 0.0
    %1567 = vmatpush1.msra.mxu0 %v1309
    %1568 = vmatprep.subr.mxu0 0.0
    %1569 = vmatpush1.msra.mxu0 %v1310
    %1570 = vmatprep.mubr.f32.mxu0 %v1357
    %1571 = vmatmul.mubr.f32.gmra.mrb[0].mxu0 %v1356
    %v1572 = vpop.f32.mrb[0].mxu0
    %v1573 = vadd.f32 0.0, %v1572
    %v1574 = vpop.f32.mrb[0].mxu0
    %1575 = vdwg.mxu0
    %1576 = vmatprep.subr.mxu0 0.0
    %1577 = vmatpush1.msra.mxu0 %v1311
    %1578 = vmatprep.subr.mxu0 0.0
    %1579 = vmatpush1.msra.mxu0 %v1312
    %1580 = vmatprep.subr.mxu0 0.0
    %1581 = vmatpush1.msra.mxu0 %v1313
    %1582 = vmatprep.subr.mxu0 0.0
    %1583 = vmatpush1.msra.mxu0 %v1314
    %1584 = vmatprep.subr.mxu0 0.0
    %1585 = vmatpush1.msra.mxu0 %v1315
    %1586 = vmatprep.subr.mxu0 0.0
    %1587 = vmatpush1.msra.mxu0 %v1316
    %1588 = vmatprep.subr.mxu0 0.0
    %1589 = vmatpush1.msra.mxu0 %v1317
    %1590 = vmatprep.subr.mxu0 0.0
    %1591 = vmatpush1.msra.mxu0 %v1318
    %1592 = vmatprep.subr.mxu0 0.0
    %1593 = vmatpush1.msra.mxu0 %v1319
    %1594 = vmatprep.subr.mxu0 0.0
    %1595 = vmatpush1.msra.mxu0 %v1320
    %1596 = vmatprep.subr.mxu0 0.0
    %1597 = vmatpush1.msra.mxu0 %v1321
    %1598 = vmatprep.subr.mxu0 0.0
    %1599 = vmatpush1.msra.mxu0 %v1322
    %1600 = vmatprep.subr.mxu0 0.0
    %1601 = vmatpush1.msra.mxu0 %v1323
    %1602 = vmatprep.subr.mxu0 0.0
    %1603 = vmatpush1.msra.mxu0 %v1324
    %1604 = vmatprep.subr.mxu0 0.0
    %1605 = vmatpush1.msra.mxu0 %v1325
    %1606 = vmatprep.subr.mxu0 0.0
    %1607 = vmatpush1.msra.mxu0 %v1326
    %1608 = vmatprep.subr.mxu0 0.0
    %1609 = vmatpush1.msra.mxu0 %v1327
    %1610 = vmatprep.subr.mxu0 0.0
    %1611 = vmatpush1.msra.mxu0 %v1328
    %1612 = vmatprep.subr.mxu0 0.0
    %1613 = vmatpush1.msra.mxu0 %v1329
    %1614 = vmatprep.subr.mxu0 0.0
    %1615 = vmatpush1.msra.mxu0 %v1330
    %1616 = vmatprep.subr.mxu0 0.0
    %1617 = vmatpush1.msra.mxu0 %v1331
    %1618 = vmatprep.subr.mxu0 0.0
    %1619 = vmatpush1.msra.mxu0 %v1332
    %1620 = vmatprep.subr.mxu0 0.0
    %1621 = vmatpush1.msra.mxu0 %v1333
    %1622 = vmatprep.subr.mxu0 0.0
    %1623 = vmatpush1.msra.mxu0 %v1334
    %1624 = vmatprep.subr.mxu0 0.0
    %1625 = vmatpush1.msra.mxu0 %v1335
    %1626 = vmatprep.subr.mxu0 0.0
    %1627 = vmatpush1.msra.mxu0 %v1336
    %1628 = vmatprep.subr.mxu0 0.0
    %1629 = vmatpush1.msra.mxu0 %v1337
    %1630 = vmatprep.subr.mxu0 0.0
    %1631 = vmatpush1.msra.mxu0 %v1338
    %1632 = vmatprep.subr.mxu0 0.0
    %1633 = vmatpush1.msra.mxu0 %v1339
    %1634 = vmatprep.subr.mxu0 0.0
    %1635 = vmatpush1.msra.mxu0 %v1340
    %1636 = vmatprep.subr.mxu0 0.0
    %1637 = vmatpush1.msra.mxu0 %v1341
    %1638 = vmatprep.subr.mxu0 0.0
    %1639 = vmatpush1.msra.mxu0 %v1342
    %1640 = vmatprep.mubr.f32.mxu0 %v1359
    %1641 = vmatmul.mubr.f32.gmra.mrb[0].mxu0 %v1358
    %v1642 = vpop.f32.mrb[0].mxu0
    %v1643 = vadd.f32 %v1573, %v1642
    %v1644 = vpop.f32.mrb[0].mxu0
    %1645 = vdwg.mxu0
    %v1646 = vsub.f32 %v1503, %v1643
    %v1647 = vadd.f32 %v1503, %v1643
    %vm1648 = vcmp.lt.f32.partialorder %v1646, 0.0
    %vm1649 = vcmp.gt.f32.partialorder %v1647, 0.0
    %vm1650 = vmand %vm1648, %vm1649
    %v1651 = vsel %vm1650, 1, 0
    %v1652 = vcvt.s32.f32 %v1651
    %v1653 = vsub.f32 %v1647, %v1646
    %v1654 = vadd.f32 %v1653, 1e-06
    %v1655 = vrcp.pop %v1654
    %v1656 = vmul.f32 %v1647, %v1655
    %v1657 = vmul.f32 %v1652, %v1656
    %v1658 = vsub.f32 1.0, %v1652
    %v1659 = vadd.f32 %v1657, %v1658
    %v1660 = vsel %vm1649, 1, 0
    %v1661 = vcvt.s32.f32 %v1660
    %v1662 = vmul.f32 %v1659, %v1661
    %v1663 = vmax.f32 %v1646, 0.0
    %v1664 = vmax.f32 %v1647, 0.0
    %vm1665 = vcmask 254976
    %1666 = vst.msk [vmem:[#allocation11] sm:$0x3] %vm1665, %v1662
    %v1667 = vld [vmem:[%s8] sm:$0xff]
    %v1668 = vld [vmem:[%s8 + $0x8] sm:$0xff]
    %v1669 = vld [vmem:[%s8 + $0x10] sm:$0xff]
    %v1670 = vld [vmem:[%s8 + $0x18] sm:$0xff]
    %v1671 = vld [vmem:[%s9] sm:$0xff]
    %v1672 = vld [vmem:[%s9 + $0x8] sm:$0xff]
    %v1673 = vld [vmem:[%s9 + $0x10] sm:$0xff]
    %v1674 = vld [vmem:[%s9 + $0x18] sm:$0xff]
    %v1675 = vld [vmem:[%s10] sm:$0x1]
    %v1676 = vadd.f32 %v1663, %v1664
    %v1677 = vmul.f32 %v1676, 0.5
    %v1678 = vsub.f32 %v1664, %v1663
    %v1679 = vmul.f32 %v1678, 0.5
    %v1681 = vlaneseq
    %v1682 = vshrl.u32 %v1681, 7
    %v1683 = vsub.s32 0, %v1682
    %v1684 = vrot.slane %v1675, %v1683
    %vm1686 = vcmask 261120
    %v1688 = vsel %vm1686, %v1677, 0
    %1690 = vmatprep.subr.mxu0 0.0
    %1691 = vmatpush1.msra.mxu0 %v1667
    %1692 = vmatprep.subr.mxu0 0.0
    %1693 = vmatpush1.msra.mxu0 %v1668
    %1694 = vmatprep.subr.mxu0 0.0
    %1695 = vmatpush1.msra.mxu0 %v1669
    %1696 = vmatprep.subr.mxu0 0.0
    %1697 = vmatpush1.msra.mxu0 %v1670
    %1698 = vmatprep.subr.mxu0 0.0
    %1699 = vmatpush1.msra.mxu0 0.0
    %1700 = vmatprep.subr.mxu0 0.0
    %1701 = vmatpush1.msra.mxu0 0.0
    %1702 = vmatprep.subr.mxu0 0.0
    %1703 = vmatpush1.msra.mxu0 0.0
    %1704 = vmatprep.subr.mxu0 0.0
    %1705 = vmatpush1.msra.mxu0 0.0
    %1706 = vmatprep.subr.mxu0 0.0
    %1707 = vmatpush1.msra.mxu0 0.0
    %1708 = vmatprep.subr.mxu0 0.0
    %1709 = vmatpush1.msra.mxu0 0.0
    %1710 = vmatprep.subr.mxu0 0.0
    %1711 = vmatpush1.msra.mxu0 0.0
    %1712 = vmatprep.subr.mxu0 0.0
    %1713 = vmatpush1.msra.mxu0 0.0
    %1714 = vmatprep.subr.mxu0 0.0
    %1715 = vmatpush1.msra.mxu0 0.0
    %1716 = vmatprep.subr.mxu0 0.0
    %1717 = vmatpush1.msra.mxu0 0.0
    %1718 = vmatprep.subr.mxu0 0.0
    %1719 = vmatpush1.msra.mxu0 0.0
    %1720 = vmatprep.subr.mxu0 0.0
    %1721 = vmatpush1.msra.mxu0 0.0
    %1722 = vmatprep.subr.mxu0 0.0
    %1723 = vmatpush1.msra.mxu0 0.0
    %1724 = vmatprep.subr.mxu0 0.0
    %1725 = vmatpush1.msra.mxu0 0.0
    %1726 = vmatprep.subr.mxu0 0.0
    %1727 = vmatpush1.msra.mxu0 0.0
    %1728 = vmatprep.subr.mxu0 0.0
    %1729 = vmatpush1.msra.mxu0 0.0
    %1730 = vmatprep.subr.mxu0 0.0
    %1731 = vmatpush1.msra.mxu0 0.0
    %1732 = vmatprep.subr.mxu0 0.0
    %1733 = vmatpush1.msra.mxu0 0.0
    %1734 = vmatprep.subr.mxu0 0.0
    %1735 = vmatpush1.msra.mxu0 0.0
    %1736 = vmatprep.subr.mxu0 0.0
    %1737 = vmatpush1.msra.mxu0 0.0
    %1738 = vmatprep.subr.mxu0 0.0
    %1739 = vmatpush1.msra.mxu0 0.0
    %1740 = vmatprep.subr.mxu0 0.0
    %1741 = vmatpush1.msra.mxu0 0.0
    %1742 = vmatprep.subr.mxu0 0.0
    %1743 = vmatpush1.msra.mxu0 0.0
    %1744 = vmatprep.subr.mxu0 0.0
    %1745 = vmatpush1.msra.mxu0 0.0
    %1746 = vmatprep.subr.mxu0 0.0
    %1747 = vmatpush1.msra.mxu0 0.0
    %1748 = vmatprep.subr.mxu0 0.0
    %1749 = vmatpush1.msra.mxu0 0.0
    %1750 = vmatprep.subr.mxu0 0.0
    %1751 = vmatpush1.msra.mxu0 0.0
    %1752 = vmatprep.subr.mxu0 0.0
    %1753 = vmatpush1.msra.mxu0 0.0
    %1754 = vmatprep.mubr.f32.mxu0 0.0
    %1755 = vmatmul.mubr.f32.gmra.mrb[0].mxu0 %v1688
    %v1756 = vpop.f32.mrb[0].mxu0
    %v1757 = vadd.f32 %v1684, %v1756
    %v1758 = vpop.f32.mrb[0].mxu0
    %1759 = vdwg.mxu0
    %v1761 = vsel %vm1686, %v1679, 0
    %1763 = vmatprep.subr.mxu0 0.0
    %1764 = vmatpush1.msra.mxu0 %v1671
    %1765 = vmatprep.subr.mxu0 0.0
    %1766 = vmatpush1.msra.mxu0 %v1672
    %1767 = vmatprep.subr.mxu0 0.0
    %1768 = vmatpush1.msra.mxu0 %v1673
    %1769 = vmatprep.subr.mxu0 0.0
    %1770 = vmatpush1.msra.mxu0 %v1674
    %1771 = vmatprep.subr.mxu0 0.0
    %1772 = vmatpush1.msra.mxu0 0.0
    %1773 = vmatprep.subr.mxu0 0.0
    %1774 = vmatpush1.msra.mxu0 0.0
    %1775 = vmatprep.subr.mxu0 0.0
    %1776 = vmatpush1.msra.mxu0 0.0
    %1777 = vmatprep.subr.mxu0 0.0
    %1778 = vmatpush1.msra.mxu0 0.0
    %1779 = vmatprep.subr.mxu0 0.0
    %1780 = vmatpush1.msra.mxu0 0.0
    %1781 = vmatprep.subr.mxu0 0.0
    %1782 = vmatpush1.msra.mxu0 0.0
    %1783 = vmatprep.subr.mxu0 0.0
    %1784 = vmatpush1.msra.mxu0 0.0
    %1785 = vmatprep.subr.mxu0 0.0
    %1786 = vmatpush1.msra.mxu0 0.0
    %1787 = vmatprep.subr.mxu0 0.0
    %1788 = vmatpush1.msra.mxu0 0.0
    %1789 = vmatprep.subr.mxu0 0.0
    %1790 = vmatpush1.msra.mxu0 0.0
    %1791 = vmatprep.subr.mxu0 0.0
    %1792 = vmatpush1.msra.mxu0 0.0
    %1793 = vmatprep.subr.mxu0 0.0
    %1794 = vmatpush1.msra.mxu0 0.0
    %1795 = vmatprep.subr.mxu0 0.0
    %1796 = vmatpush1.msra.mxu0 0.0
    %1797 = vmatprep.subr.mxu0 0.0
    %1798 = vmatpush1.msra.mxu0 0.0
    %1799 = vmatprep.subr.mxu0 0.0
    %1800 = vmatpush1.msra.mxu0 0.0
    %1801 = vmatprep.subr.mxu0 0.0
    %1802 = vmatpush1.msra.mxu0 0.0
    %1803 = vmatprep.subr.mxu0 0.0
    %1804 = vmatpush1.msra.mxu0 0.0
    %1805 = vmatprep.subr.mxu0 0.0
    %1806 = vmatpush1.msra.mxu0 0.0
    %1807 = vmatprep.subr.mxu0 0.0
    %1808 = vmatpush1.msra.mxu0 0.0
    %1809 = vmatprep.subr.mxu0 0.0
    %1810 = vmatpush1.msra.mxu0 0.0
    %1811 = vmatprep.subr.mxu0 0.0
    %1812 = vmatpush1.msra.mxu0 0.0
    %1813 = vmatprep.subr.mxu0 0.0
    %1814 = vmatpush1.msra.mxu0 0.0
    %1815 = vmatprep.subr.mxu0 0.0
    %1816 = vmatpush1.msra.mxu0 0.0
    %1817 = vmatprep.subr.mxu0 0.0
    %1818 = vmatpush1.msra.mxu0 0.0
    %1819 = vmatprep.subr.mxu0 0.0
    %1820 = vmatpush1.msra.mxu0 0.0
    %1821 = vmatprep.subr.mxu0 0.0
    %1822 = vmatpush1.msra.mxu0 0.0
    %1823 = vmatprep.subr.mxu0 0.0
    %1824 = vmatpush1.msra.mxu0 0.0
    %1825 = vmatprep.subr.mxu0 0.0
    %1826 = vmatpush1.msra.mxu0 0.0
    %1827 = vmatprep.mubr.f32.mxu0 0.0
    %1828 = vmatmul.mubr.f32.gmra.mrb[0].mxu0 %v1761
    %v1829 = vpop.f32.mrb[0].mxu0
    %v1830 = vadd.f32 0.0, %v1829
    %v1831 = vpop.f32.mrb[0].mxu0
    %1832 = vdwg.mxu0
    %v1833 = vsub.f32 %v1757, %v1830
    %v1834 = vadd.f32 %v1757, %v1830
    %vm1835 = vcmask 74752
    %1836 = vst.msk [vmem:[#allocation7] sm:$0x3] %vm1835, %v1833
    %1837 = vst.msk [vmem:[#allocation8] sm:$0x3] %vm1835, %v1834
    // Predicated region
    $region54: #{tpu_custom_call.1} parent=1 // pred_check
      _
    $region55: #{tpu_custom_call.1} parent=1 // pred_check_branch
      %1839 = sbr.rel (0) target = $region57
    $region56: #{tpu_custom_call.1} parent=1 // pred_region
      %s1841 = ssub.s32 32, 32
      %1842 = vsyncadd [#allocation4], %s1841
      %s1844 = sshll.u32 [#allocation7], 4
      %s1845 = int_to_ptr.vmem [resolvable:$true] %s1844
      %1847 = dma.vmem_to_hbm [thread:$0]  %s1845, 32, %s11, [#allocation4]
    $region57: #{tpu_custom_call.1} parent=1 // pred_fallthru
      _
    // Predicated region
    $region58: #{tpu_custom_call.1} parent=1 // pred_check
      _
    $region59: #{tpu_custom_call.1} parent=1 // pred_check_branch
      %1849 = sbr.rel (0) target = $region61
    $region60: #{tpu_custom_call.1} parent=1 // pred_region
      %s1851 = ssub.s32 32, 32
      %1852 = vsyncadd [#allocation9], %s1851
      %s1854 = sshll.u32 [#allocation8], 4
      %s1855 = int_to_ptr.vmem [resolvable:$true] %s1854
      %1857 = dma.vmem_to_hbm [thread:$0]  %s1855, 32, %s12, [#allocation9]
    $region61: #{tpu_custom_call.1} parent=1 // pred_fallthru
      _
    // Predicated region
    $region62: #{tpu_custom_call.1} parent=1 // pred_check
      _
    $region63: #{tpu_custom_call.1} parent=1 // pred_check_branch
      %1859 = sbr.rel (0) target = $region65
    $region64: #{tpu_custom_call.1} parent=1 // pred_region
      %s1861 = ssub.s32 128, 128
      %1862 = vsyncadd [#allocation9], %s1861
      %s1864 = sshll.u32 [#allocation10], 4
      %s1865 = int_to_ptr.vmem [resolvable:$true] %s1864
      %1867 = dma.vmem_to_hbm [thread:$0]  %s1865, 128, %s13, [#allocation9]
    $region65: #{tpu_custom_call.1} parent=1 // pred_fallthru
      _
    // Predicated region
    $region66: #{tpu_custom_call.1} parent=1 // pred_check
      _
    $region67: #{tpu_custom_call.1} parent=1 // pred_check_branch
      %1869 = sbr.rel (0) target = $region69
    $region68: #{tpu_custom_call.1} parent=1 // pred_region
      %s1871 = ssub.s32 32, 32
      %1872 = vsyncadd [#allocation12], %s1871
      %s1874 = sshll.u32 [#allocation11], 4
      %s1875 = int_to_ptr.vmem [resolvable:$true] %s1874
      %1877 = dma.vmem_to_hbm [thread:$0]  %s1875, 32, %s14, [#allocation12]
    $region69: #{tpu_custom_call.1} parent=1 // pred_fallthru
      _
    // Predicated region
    $region70: #{tpu_custom_call.1} parent=1 // pred_check
      _
    $region71: #{tpu_custom_call.1} parent=1 // pred_check_branch
      %1879 = sbr.rel (0) target = $region73
    $region72: #{tpu_custom_call.1} parent=1 // pred_region
      %1880 = dma.done [#allocation4], 32
    $region73: #{tpu_custom_call.1} parent=1 // pred_fallthru
      _
    // Predicated region
    $region74: #{tpu_custom_call.1} parent=1 // pred_check
      _
    $region75: #{tpu_custom_call.1} parent=1 // pred_check_branch
      %1882 = sbr.rel (0) target = $region77
    $region76: #{tpu_custom_call.1} parent=1 // pred_region
      %1883 = dma.done [#allocation9], 32
    $region77: #{tpu_custom_call.1} parent=1 // pred_fallthru
      _
    // Predicated region
    $region78: #{tpu_custom_call.1} parent=1 // pred_check
      _
    $region79: #{tpu_custom_call.1} parent=1 // pred_check_branch
      %1885 = sbr.rel (0) target = $region81
    $region80: #{tpu_custom_call.1} parent=1 // pred_region
      %1886 = dma.done [#allocation9], 128
    $region81: #{tpu_custom_call.1} parent=1 // pred_fallthru
      _
    // Predicated region
    $region82: #{tpu_custom_call.1} parent=1 // pred_check
      _
    $region83: #{tpu_custom_call.1} parent=1 // pred_check_branch
      %1888 = sbr.rel (0) target = $region85
    $region84: #{tpu_custom_call.1} parent=1 // pred_region
      %1889 = dma.done [#allocation12], 32
    $region85: #{tpu_custom_call.1} parent=1 // pred_fallthru
      _
    %1890 = vsyncpa [#allocation3], 1
    %1891 = vsyncpa [#allocation6], 1
    %1892 = vsyncpa [#allocation4], 1
    %1893 = vsyncpa [#allocation9], 1
    %1894 = vsyncpa [#allocation12], 1

</llo_original>
